<compile_context>
chip_gen: v5e
topology: v5e:2x2
jax: 0.10.0
libtpu: 0.0.40
codegen_flags: <defaults>
</compile_context>

<pallas_src>
import jax
import jax.numpy as jnp
import numpy as np
from jax.experimental import pallas as pl
from jax.experimental.pallas import tpu as pltpu

X_DIM, H1, H2, Y_DIM = 784, 300, 150, 10
# Lane-aligned (multiple-of-128) padded hidden/output dims. The 784 input dim is NOT
# padded (a (tb, 784) block equals the full array extent, which is legal).
H1_PAD, H2_PAD, Y_PAD = 384, 256, 128


def _round_up(n, m):
    return ((n + m - 1) // m) * m


def _mlp_kernel(x_ref, w1_ref, b1_ref, w2_ref, b2_ref, w3_ref, b3_ref, o_ref):
    # One batch tile per grid step; all (padded) weights/biases stay VMEM-resident
    # across the grid (constant index_map), so only x / out tiles are DMA'd per step.
    wdtype = w1_ref.dtype
    x = x_ref[...].astype(wdtype)                       # VPU cast, hidden under MXU
    h1 = jnp.dot(x, w1_ref[...], preferred_element_type=jnp.float32) + b1_ref[...]
    h1 = jnp.maximum(h1, 0.0).astype(wdtype)            # ReLU, keep MXU inputs narrow
    h2 = jnp.dot(h1, w2_ref[...], preferred_element_type=jnp.float32) + b2_ref[...]
    h2 = jnp.maximum(h2, 0.0).astype(wdtype)            # ReLU
    out = jnp.dot(h2, w3_ref[...], preferred_element_type=jnp.float32) + b3_ref[...]
    o_ref[...] = out.astype(o_ref.dtype)                # lane-dense 128-wide store


def _pad_params(params, dtype):
    """Zero-pad (in,out)-layout weights/biases to lane-aligned padded dims."""
    w1, b1, w2, b2, w3, b3 = params
    w1p = jnp.zeros((X_DIM, H1_PAD), dtype).at[:, :H1].set(w1.astype(dtype))
    b1p = jnp.zeros((1, H1_PAD), jnp.float32).at[:, :H1].set(b1.astype(jnp.float32))
    w2p = jnp.zeros((H1_PAD, H2_PAD), dtype).at[:H1, :H2].set(w2.astype(dtype))
    b2p = jnp.zeros((1, H2_PAD), jnp.float32).at[:, :H2].set(b2.astype(jnp.float32))
    w3p = jnp.zeros((H2_PAD, Y_PAD), dtype).at[:H2, :Y_DIM].set(w3.astype(dtype))
    b3p = jnp.zeros((1, Y_PAD), jnp.float32).at[:, :Y_DIM].set(b3.astype(jnp.float32))
    return w1p, b1p, w2p, b2p, w3p, b3p


def toynet_mnist_forward(x, params, *, param_dtype=jnp.bfloat16, block_b=2048):
    """x: [B, ...] (flattened to [B, 784] if ndim > 2). Returns f32 logits [B, 10]."""
    if x.ndim > 2:
        x = x.reshape(x.shape[0], -1)
    B = x.shape[0]
    assert x.shape[1] == X_DIM

    w1, b1, w2, b2, w3, b3 = _pad_params(params, param_dtype)

    # Batch tile: big enough to amortize per-step pipeline overhead, but capped at
    # ceil(B/2) (rounded to a sublane multiple) so the parallel batch axis has at
    # least two grid steps (2-TensorCore sharding on v7x).
    tb = min(block_b, max(8, _round_up(pl.cdiv(B, 2), 8)))
    grid = (pl.cdiv(B, tb),)

    # VMEM budget: double-buffered x/out tiles + resident weights + kernel temporaries,
    # with ~50% headroom; never request the whole v7x per-core VMEM (64 MiB).
    w_itemsize = np.dtype(param_dtype).itemsize
    weight_bytes = (X_DIM * H1_PAD + H1_PAD * H2_PAD + H2_PAD * Y_PAD) * w_itemsize
    bias_bytes = (H1_PAD + H2_PAD + Y_PAD) * 4
    temp_bytes = tb * (X_DIM + 2 * H1_PAD + 2 * H2_PAD + Y_PAD) * 4
    vmem_need = (
        2 * tb * X_DIM * x.dtype.itemsize
        + 2 * tb * Y_PAD * 4
        + 2 * (weight_bytes + bias_bytes)
        + temp_bytes
    )
    vmem_limit = int(min(max(int(vmem_need * 1.5), 16 * 1024 * 1024),
                         56 * 1024 * 1024))

    flops = 2 * B * (X_DIM * H1 + H1 * H2 + H2 * Y_DIM)
    bytes_accessed = (
        B * X_DIM * x.dtype.itemsize + weight_bytes + bias_bytes + B * Y_PAD * 4
    )

    def run(single_buffer_weights):
        if single_buffer_weights:
            # Constant-index_map (resident) operands only need one VMEM buffer.
            wspec = lambda shape: pl.BlockSpec(
                shape, lambda i: (0, 0), pipeline_mode=pl.Buffered(1))
        else:
            wspec = lambda shape: pl.BlockSpec(shape, lambda i: (0, 0))
        return pl.pallas_call(
            _mlp_kernel,
            out_shape=jax.ShapeDtypeStruct((B, Y_PAD), jnp.float32),
            grid=grid,
            in_specs=[
                pl.BlockSpec((tb, X_DIM), lambda i: (i, 0)),     # streamed input tile
                wspec((X_DIM, H1_PAD)),                          # resident weights
                wspec((1, H1_PAD)),
                wspec((H1_PAD, H2_PAD)),
                wspec((1, H2_PAD)),
                wspec((H2_PAD, Y_PAD)),
                wspec((1, Y_PAD)),
            ],
            out_specs=pl.BlockSpec((tb, Y_PAD), lambda i: (i, 0)),  # streamed out tile
            compiler_params=pltpu.CompilerParams(
                dimension_semantics=("parallel",),               # 2x TC sharding, v7x
                vmem_limit_bytes=vmem_limit,
            ),
            cost_estimate=pl.CostEstimate(
                flops=flops, transcendentals=0, bytes_accessed=bytes_accessed
            ),
        )(x, w1, b1, w2, b2, w3, b3)

    try:
        out = run(True)
    except Exception:  # fallback if single-buffer pipeline_mode is unsupported
        out = run(False)

    return out[:B, :Y_DIM]


def init_params(key):
    """kaiming_uniform(a=0, mode='fan_in') weights (bound sqrt(6/fan_in)) and zero
    biases, matching the module's weight_init('kaiming'). Weights stored (in, out) so
    the kernel computes y = x @ W + b (== torch's x @ W.T with W=(out, in))."""
    def kaiming_uniform(k, fan_in, fan_out):
        bound = np.sqrt(6.0 / fan_in)
        return jax.random.uniform(k, (fan_in, fan_out), jnp.float32, -bound, bound)

    k1, k2, k3 = jax.random.split(key, 3)
    return (
        kaiming_uniform(k1, X_DIM, H1), jnp.zeros((1, H1), jnp.float32),
        kaiming_uniform(k2, H1, H2), jnp.zeros((1, H2), jnp.float32),
        kaiming_uniform(k3, H2, Y_DIM), jnp.zeros((1, Y_DIM), jnp.float32),
    )


def _reference_forward(x, params, compute_dtype=jnp.float32):
    """Pure-JAX reference mirroring the kernel's numerics (operands cast to
    compute_dtype before each matmul, f32 accumulation)."""
    if x.ndim > 2:
        x = x.reshape(x.shape[0], -1)
    w1, b1, w2, b2, w3, b3 = params
    c = lambda a: a.astype(compute_dtype)
    h1 = jnp.maximum(jnp.dot(c(x), c(w1), preferred_element_type=jnp.float32) + b1, 0.0)
    h2 = jnp.maximum(jnp.dot(c(h1), c(w2), preferred_element_type=jnp.float32) + b2, 0.0)
    return jnp.dot(c(h2), c(w3), preferred_element_type=jnp.float32) + b3


if __name__ == "__main__":
    key = jax.random.PRNGKey(0)
    k_params, k_x = jax.random.split(key)

    params = init_params(k_params)
    # MNIST-like input: NCHW [batch=8, channels=1, 28, 28] -> flattened to [8, 784].
    x = jax.random.normal(k_x, (8, 1, 28, 28), jnp.float32)

    # f32 weight path: must match the exact f32 reference.
    out_f32 = jax.block_until_ready(
        toynet_mnist_forward(x, params, param_dtype=jnp.float32))
    ref_f32 = _reference_forward(x, params, jnp.float32)
    assert out_f32.shape == (8, Y_DIM)
    assert jnp.allclose(out_f32, ref_f32, atol=1e-4, rtol=1e-4)

    # Default bf16 weight path (perf config): compare against a bf16-cast reference.
    out_bf16 = jax.block_until_ready(toynet_mnist_forward(x, params))
    ref_bf16 = _reference_forward(x, params, jnp.bfloat16)
    assert out_bf16.shape == (8, Y_DIM)
    assert jnp.allclose(out_bf16, ref_bf16, atol=2e-2, rtol=2e-2)

    print("KERNEL_OK")
</pallas_src>

<mosaic_0001>
module attributes {stable_mosaic.version = 11 : i64} {
  func.func @_mlp_kernel(%arg0: i32, %arg1: memref<8x784xf32, #tpu.memory_space<vmem>>, %arg2: memref<784x384xf32, #tpu.memory_space<vmem>>, %arg3: memref<1x384xf32, #tpu.memory_space<vmem>>, %arg4: memref<384x256xf32, #tpu.memory_space<vmem>>, %arg5: memref<1x256xf32, #tpu.memory_space<vmem>>, %arg6: memref<256x128xf32, #tpu.memory_space<vmem>>, %arg7: memref<1x128xf32, #tpu.memory_space<vmem>>, %arg8: memref<8x128xf32, #tpu.memory_space<vmem>>) attributes {dimension_semantics = [#tpu.dimension_semantics<parallel>], iteration_bounds = array<i64: 1>, scalar_prefetch = 0 : i64, scratch_operands = 0 : i64, tpu.core_type = #tpu.core_type<tc>, window_params = [{transform_indices = @transform_0, window_bounds = array<i64: 8, 784>}, {pipeline_mode = #tpu.pipeline_mode<synchronous>, transform_indices = @transform_1, window_bounds = array<i64: 784, 384>}, {pipeline_mode = #tpu.pipeline_mode<synchronous>, transform_indices = @transform_2, window_bounds = array<i64: 1, 384>}, {pipeline_mode = #tpu.pipeline_mode<synchronous>, transform_indices = @transform_3, window_bounds = array<i64: 384, 256>}, {pipeline_mode = #tpu.pipeline_mode<synchronous>, transform_indices = @transform_4, window_bounds = array<i64: 1, 256>}, {pipeline_mode = #tpu.pipeline_mode<synchronous>, transform_indices = @transform_5, window_bounds = array<i64: 256, 128>}, {pipeline_mode = #tpu.pipeline_mode<synchronous>, transform_indices = @transform_6, window_bounds = array<i64: 1, 128>}, {transform_indices = @transform_7, window_bounds = array<i64: 8, 128>}]} {
    %c0 = arith.constant 0 : index
    %c0_0 = arith.constant 0 : index
    %0 = vector.load %arg1[%c0, %c0_0] : memref<8x784xf32, #tpu.memory_space<vmem>>, vector<8x784xf32>
    %c0_1 = arith.constant 0 : index
    %c0_2 = arith.constant 0 : index
    %1 = vector.load %arg2[%c0_1, %c0_2] : memref<784x384xf32, #tpu.memory_space<vmem>>, vector<784x384xf32>
    %cst = arith.constant dense<0.000000e+00> : vector<8x384xf32>
    %2 = tpu.matmul %0, %1, %cst {dimension_numbers = #tpu.dot_dimension_numbers<[1], [0], [0], [1], [0, 0, 1, 1], [], []>} : vector<8x784xf32>, vector<784x384xf32>, vector<8x384xf32> -> vector<8x384xf32>
    %c0_3 = arith.constant 0 : index
    %c0_4 = arith.constant 0 : index
    %3 = vector.load %arg3[%c0_3, %c0_4] : memref<1x384xf32, #tpu.memory_space<vmem>>, vector<1x384xf32>
    %4 = vector.broadcast %3 : vector<1x384xf32> to vector<8x384xf32>
    %5 = arith.addf %2, %4 : vector<8x384xf32>
    %cst_5 = arith.constant 0.000000e+00 : f32
    %6 = vector.broadcast %cst_5 : f32 to vector<8x384xf32>
    %7 = arith.maximumf %5, %6 : vector<8x384xf32>
    %c0_6 = arith.constant 0 : index
    %c0_7 = arith.constant 0 : index
    %8 = vector.load %arg4[%c0_6, %c0_7] : memref<384x256xf32, #tpu.memory_space<vmem>>, vector<384x256xf32>
    %cst_8 = arith.constant dense<0.000000e+00> : vector<8x256xf32>
    %9 = tpu.matmul %7, %8, %cst_8 {dimension_numbers = #tpu.dot_dimension_numbers<[1], [0], [0], [1], [0, 0, 1, 1], [], []>} : vector<8x384xf32>, vector<384x256xf32>, vector<8x256xf32> -> vector<8x256xf32>
    %c0_9 = arith.constant 0 : index
    %c0_10 = arith.constant 0 : index
    %10 = vector.load %arg5[%c0_9, %c0_10] : memref<1x256xf32, #tpu.memory_space<vmem>>, vector<1x256xf32>
    %11 = vector.broadcast %10 : vector<1x256xf32> to vector<8x256xf32>
    %12 = arith.addf %9, %11 : vector<8x256xf32>
    %cst_11 = arith.constant 0.000000e+00 : f32
    %13 = vector.broadcast %cst_11 : f32 to vector<8x256xf32>
    %14 = arith.maximumf %12, %13 : vector<8x256xf32>
    %c0_12 = arith.constant 0 : index
    %c0_13 = arith.constant 0 : index
    %15 = vector.load %arg6[%c0_12, %c0_13] : memref<256x128xf32, #tpu.memory_space<vmem>>, vector<256x128xf32>
    %cst_14 = arith.constant dense<0.000000e+00> : vector<8x128xf32>
    %16 = tpu.matmul %14, %15, %cst_14 {dimension_numbers = #tpu.dot_dimension_numbers<[1], [0], [0], [1], [0, 0, 1, 1], [], []>} : vector<8x256xf32>, vector<256x128xf32>, vector<8x128xf32> -> vector<8x128xf32>
    %c0_15 = arith.constant 0 : index
    %c0_16 = arith.constant 0 : index
    %17 = vector.load %arg7[%c0_15, %c0_16] : memref<1x128xf32, #tpu.memory_space<vmem>>, vector<1x128xf32>
    %18 = vector.broadcast %17 : vector<1x128xf32> to vector<8x128xf32>
    %19 = arith.addf %16, %18 : vector<8x128xf32>
    %c0_17 = arith.constant 0 : index
    %c0_18 = arith.constant 0 : index
    %20 = vector.load %arg8[%c0_17, %c0_18] : memref<8x128xf32, #tpu.memory_space<vmem>>, vector<8x128xf32>
    tpu.vector_store %arg8[%c0_17, %c0_18], %19 {strides = array<i32>} : memref<8x128xf32, #tpu.memory_space<vmem>>, vector<8x128xf32>,
    return
  }
  func.func @transform_0(%arg0: i32) -> (i32, i32) {
    %c0_i32 = arith.constant 0 : i32
    %c0_i32_0 = arith.constant 0 : i32
    return %arg0, %c0_i32 : i32, i32
  }
  func.func @transform_1(%arg0: i32) -> (i32, i32) {
    %c0_i32 = arith.constant 0 : i32
    %c0_i32_0 = arith.constant 0 : i32
    %c0_i32_1 = arith.constant 0 : i32
    return %c0_i32, %c0_i32_0 : i32, i32
  }
  func.func @transform_2(%arg0: i32) -> (i32, i32) {
    %c0_i32 = arith.constant 0 : i32
    %c0_i32_0 = arith.constant 0 : i32
    %c0_i32_1 = arith.constant 0 : i32
    return %c0_i32, %c0_i32_0 : i32, i32
  }
  func.func @transform_3(%arg0: i32) -> (i32, i32) {
    %c0_i32 = arith.constant 0 : i32
    %c0_i32_0 = arith.constant 0 : i32
    %c0_i32_1 = arith.constant 0 : i32
    return %c0_i32, %c0_i32_0 : i32, i32
  }
  func.func @transform_4(%arg0: i32) -> (i32, i32) {
    %c0_i32 = arith.constant 0 : i32
    %c0_i32_0 = arith.constant 0 : i32
    %c0_i32_1 = arith.constant 0 : i32
    return %c0_i32, %c0_i32_0 : i32, i32
  }
  func.func @transform_5(%arg0: i32) -> (i32, i32) {
    %c0_i32 = arith.constant 0 : i32
    %c0_i32_0 = arith.constant 0 : i32
    %c0_i32_1 = arith.constant 0 : i32
    return %c0_i32, %c0_i32_0 : i32, i32
  }
  func.func @transform_6(%arg0: i32) -> (i32, i32) {
    %c0_i32 = arith.constant 0 : i32
    %c0_i32_0 = arith.constant 0 : i32
    %c0_i32_1 = arith.constant 0 : i32
    return %c0_i32, %c0_i32_0 : i32, i32
  }
  func.func @transform_7(%arg0: i32) -> (i32, i32) {
    %c0_i32 = arith.constant 0 : i32
    %c0_i32_0 = arith.constant 0 : i32
    return %arg0, %c0_i32 : i32, i32
  }
}

module attributes {stable_mosaic.version = 11 : i64} {
  func.func @_mlp_kernel(%arg0: i32, %arg1: memref<8x784xf32, #tpu.memory_space<vmem>>, %arg2: memref<784x384xf32, #tpu.memory_space<vmem>>, %arg3: memref<1x384xf32, #tpu.memory_space<vmem>>, %arg4: memref<384x256xf32, #tpu.memory_space<vmem>>, %arg5: memref<1x256xf32, #tpu.memory_space<vmem>>, %arg6: memref<256x128xf32, #tpu.memory_space<vmem>>, %arg7: memref<1x128xf32, #tpu.memory_space<vmem>>, %arg8: memref<8x128xf32, #tpu.memory_space<vmem>>) attributes {dimension_semantics = [#tpu.dimension_semantics<parallel>], iteration_bounds = array<i64: 1>, scalar_prefetch = 0 : i64, scratch_operands = 0 : i64, tpu.core_type = #tpu.core_type<tc>, window_params = [{transform_indices = @transform_0, window_bounds = array<i64: 8, 784>}, {pipeline_mode = #tpu.pipeline_mode<synchronous>, transform_indices = @transform_1, window_bounds = array<i64: 784, 384>}, {pipeline_mode = #tpu.pipeline_mode<synchronous>, transform_indices = @transform_2, window_bounds = array<i64: 1, 384>}, {pipeline_mode = #tpu.pipeline_mode<synchronous>, transform_indices = @transform_3, window_bounds = array<i64: 384, 256>}, {pipeline_mode = #tpu.pipeline_mode<synchronous>, transform_indices = @transform_4, window_bounds = array<i64: 1, 256>}, {pipeline_mode = #tpu.pipeline_mode<synchronous>, transform_indices = @transform_5, window_bounds = array<i64: 256, 128>}, {pipeline_mode = #tpu.pipeline_mode<synchronous>, transform_indices = @transform_6, window_bounds = array<i64: 1, 128>}, {transform_indices = @transform_7, window_bounds = array<i64: 8, 128>}]} {
    %c0 = arith.constant 0 : index
    %c0_0 = arith.constant 0 : index
    %0 = vector.load %arg1[%c0, %c0_0] : memref<8x784xf32, #tpu.memory_space<vmem>>, vector<8x784xf32>
    %c0_1 = arith.constant 0 : index
    %c0_2 = arith.constant 0 : index
    %1 = vector.load %arg2[%c0_1, %c0_2] : memref<784x384xf32, #tpu.memory_space<vmem>>, vector<784x384xf32>
    %cst = arith.constant dense<0.000000e+00> : vector<8x384xf32>
    %2 = tpu.matmul %0, %1, %cst {dimension_numbers = #tpu.dot_dimension_numbers<[1], [0], [0], [1], [0, 0, 1, 1], [], []>} : vector<8x784xf32>, vector<784x384xf32>, vector<8x384xf32> -> vector<8x384xf32>
    %c0_3 = arith.constant 0 : index
    %c0_4 = arith.constant 0 : index
    %3 = vector.load %arg3[%c0_3, %c0_4] : memref<1x384xf32, #tpu.memory_space<vmem>>, vector<1x384xf32>
    %4 = vector.broadcast %3 : vector<1x384xf32> to vector<8x384xf32>
    %5 = arith.addf %2, %4 : vector<8x384xf32>
    %cst_5 = arith.constant 0.000000e+00 : f32
    %6 = vector.broadcast %cst_5 : f32 to vector<8x384xf32>
    %7 = arith.maximumf %5, %6 : vector<8x384xf32>
    %c0_6 = arith.constant 0 : index
    %c0_7 = arith.constant 0 : index
    %8 = vector.load %arg4[%c0_6, %c0_7] : memref<384x256xf32, #tpu.memory_space<vmem>>, vector<384x256xf32>
    %cst_8 = arith.constant dense<0.000000e+00> : vector<8x256xf32>
    %9 = tpu.matmul %7, %8, %cst_8 {dimension_numbers = #tpu.dot_dimension_numbers<[1], [0], [0], [1], [0, 0, 1, 1], [], []>} : vector<8x384xf32>, vector<384x256xf32>, vector<8x256xf32> -> vector<8x256xf32>
    %c0_9 = arith.constant 0 : index
    %c0_10 = arith.constant 0 : index
    %10 = vector.load %arg5[%c0_9, %c0_10] : memref<1x256xf32, #tpu.memory_space<vmem>>, vector<1x256xf32>
    %11 = vector.broadcast %10 : vector<1x256xf32> to vector<8x256xf32>
    %12 = arith.addf %9, %11 : vector<8x256xf32>
    %cst_11 = arith.constant 0.000000e+00 : f32
    %13 = vector.broadcast %cst_11 : f32 to vector<8x256xf32>
    %14 = arith.maximumf %12, %13 : vector<8x256xf32>
    %c0_12 = arith.constant 0 : index
    %c0_13 = arith.constant 0 : index
    %15 = vector.load %arg6[%c0_12, %c0_13] : memref<256x128xf32, #tpu.memory_space<vmem>>, vector<256x128xf32>
    %cst_14 = arith.constant dense<0.000000e+00> : vector<8x128xf32>
    %16 = tpu.matmul %14, %15, %cst_14 {dimension_numbers = #tpu.dot_dimension_numbers<[1], [0], [0], [1], [0, 0, 1, 1], [], []>} : vector<8x256xf32>, vector<256x128xf32>, vector<8x128xf32> -> vector<8x128xf32>
    %c0_15 = arith.constant 0 : index
    %c0_16 = arith.constant 0 : index
    %17 = vector.load %arg7[%c0_15, %c0_16] : memref<1x128xf32, #tpu.memory_space<vmem>>, vector<1x128xf32>
    %18 = vector.broadcast %17 : vector<1x128xf32> to vector<8x128xf32>
    %19 = arith.addf %16, %18 : vector<8x128xf32>
    %c0_17 = arith.constant 0 : index
    %c0_18 = arith.constant 0 : index
    %20 = vector.load %arg8[%c0_17, %c0_18] : memref<8x128xf32, #tpu.memory_space<vmem>>, vector<8x128xf32>
    tpu.vector_store %arg8[%c0_17, %c0_18], %19 {strides = array<i32>} : memref<8x128xf32, #tpu.memory_space<vmem>>, vector<8x128xf32>,
    return
  }
  func.func @transform_0(%arg0: i32) -> (i32, i32) {
    %c0_i32 = arith.constant 0 : i32
    %c0_i32_0 = arith.constant 0 : i32
    return %arg0, %c0_i32 : i32, i32
  }
  func.func @transform_1(%arg0: i32) -> (i32, i32) {
    %c0_i32 = arith.constant 0 : i32
    %c0_i32_0 = arith.constant 0 : i32
    %c0_i32_1 = arith.constant 0 : i32
    return %c0_i32, %c0_i32_0 : i32, i32
  }
  func.func @transform_2(%arg0: i32) -> (i32, i32) {
    %c0_i32 = arith.constant 0 : i32
    %c0_i32_0 = arith.constant 0 : i32
    %c0_i32_1 = arith.constant 0 : i32
    return %c0_i32, %c0_i32_0 : i32, i32
  }
  func.func @transform_3(%arg0: i32) -> (i32, i32) {
    %c0_i32 = arith.constant 0 : i32
    %c0_i32_0 = arith.constant 0 : i32
    %c0_i32_1 = arith.constant 0 : i32
    return %c0_i32, %c0_i32_0 : i32, i32
  }
  func.func @transform_4(%arg0: i32) -> (i32, i32) {
    %c0_i32 = arith.constant 0 : i32
    %c0_i32_0 = arith.constant 0 : i32
    %c0_i32_1 = arith.constant 0 : i32
    return %c0_i32, %c0_i32_0 : i32, i32
  }
  func.func @transform_5(%arg0: i32) -> (i32, i32) {
    %c0_i32 = arith.constant 0 : i32
    %c0_i32_0 = arith.constant 0 : i32
    %c0_i32_1 = arith.constant 0 : i32
    return %c0_i32, %c0_i32_0 : i32, i32
  }
  func.func @transform_6(%arg0: i32) -> (i32, i32) {
    %c0_i32 = arith.constant 0 : i32
    %c0_i32_0 = arith.constant 0 : i32
    %c0_i32_1 = arith.constant 0 : i32
    return %c0_i32, %c0_i32_0 : i32, i32
  }
  func.func @transform_7(%arg0: i32) -> (i32, i32) {
    %c0_i32 = arith.constant 0 : i32
    %c0_i32_0 = arith.constant 0 : i32
    return %arg0, %c0_i32 : i32, i32
  }
}

</mosaic_0001>

<llo_original>
// kernel: tpu_custom_call.1
$region0: #{tpu_custom_call.1}
  #allocation0 [shape = 'u32[]', space=smem, size = 0x4, offset = 0x4, fixed_abs, tag = 'smem constant byte address 0x4 - core index']
  #allocation1 [shape = 'u32[72,128]{1,0:T(1,128)}', space=vmem, size = 0x9000, scoped, tag = 'internal scratch']
  %s0 = inlined_call_operand.hbm [shape: f32[8,784], index: 0, kind: input, shape index: {}]
  %s1 = inlined_call_operand.hbm [shape: f32[784,384], index: 1, kind: input, shape index: {}]
  %s2 = inlined_call_operand.hbm [shape: f32[1,384], index: 2, kind: input, shape index: {}]
  %s3 = inlined_call_operand.hbm [shape: f32[384,256], index: 3, kind: input, shape index: {}]
  %s4 = inlined_call_operand.hbm [shape: f32[1,256], index: 4, kind: input, shape index: {}]
  %s5 = inlined_call_operand.hbm [shape: f32[256,128], index: 5, kind: input, shape index: {}]
  %s6 = inlined_call_operand.hbm [shape: f32[1,128], index: 6, kind: input, shape index: {}]
  %s7 = inlined_call_operand.hbm [shape: f32[8,128], index: 7, kind: output, shape index: {}]
  %s8 = sld [smem:[#allocation0]]
  $region66: #{tpu_custom_call.1} parent=0
    _
  %s10 = ssub.s32 1, %s8
  %s11 = scalar_select 0, %s10, %s8
  $region1: #{tpu_custom_call.1} parent=0
    #allocation2 [shape = 'u8[28672]{0}', space=vmem, size = 0x7000, scoped, tag = 'input window, operand 0, single buffered']
    #allocation3 [shape = 's32[1]{0}', space=sflag, size = 0x4, scoped, tag = 'scoped memory for tpu_custom_call.1']
    #allocation4 [shape = 's32[1]{0}', space=sflag, size = 0x4, scoped, tag = 'scoped memory for tpu_custom_call.1']
    #allocation5 [shape = 'u8[1204224]{0}', space=vmem, size = 0x126000, scoped, tag = 'input window, operand 1, single buffered']
    #allocation6 [shape = 's32[1]{0}', space=sflag, size = 0x4, scoped, tag = 'scoped memory for tpu_custom_call.1']
    #allocation7 [shape = 'u8[1536]{0}', space=vmem, size = 0x800, scoped, tag = 'input window, operand 2, single buffered']
    #allocation8 [shape = 'u8[393216]{0}', space=vmem, size = 0x60000, scoped, tag = 'input window, operand 3, single buffered']
    #allocation9 [shape = 's32[1]{0}', space=sflag, size = 0x4, scoped, tag = 'scoped memory for tpu_custom_call.1']
    #allocation10 [shape = 'u8[1024]{0}', space=vmem, size = 0x400, scoped, tag = 'input window, operand 4, single buffered']
    #allocation11 [shape = 'u8[131072]{0}', space=vmem, size = 0x20000, scoped, tag = 'input window, operand 5, single buffered']
    #allocation12 [shape = 's32[1]{0}', space=sflag, size = 0x4, scoped, tag = 'scoped memory for tpu_custom_call.1']
    #allocation13 [shape = 'u8[512]{0}', space=vmem, size = 0x400, scoped, tag = 'input window, operand 6, single buffered']
    #allocation14 [shape = 'u8[4096]{0}', space=vmem, size = 0x1000, scoped, tag = 'output window, operand 0, single buffered']
    %12 = vsyncpa [#allocation3], 0
    %13 = vsyncpa [#allocation6], 0
    %14 = vsyncpa [#allocation9], 0
    %15 = vsyncpa [#allocation12], 0
    %16 = vsyncpa [#allocation4], 0
    // Predicated region
    $region2: #{tpu_custom_call.1} parent=1 // pred_check
      _
    $region3: #{tpu_custom_call.1} parent=1 // pred_check_branch
      %18 = sbr.rel (0) target = $region5
    $region4: #{tpu_custom_call.1} parent=1 // pred_region
      %20 = vsyncadd [#allocation3], 0
      %s22 = sshll.u32 %s0, 4
      %s23 = int_to_ptr.hbm [resolvable:$true] %s22
      %s24 = sshll.u32 [#allocation2], 4
      %s25 = int_to_ptr.vmem [resolvable:$true] %s24
      %27 = dma.hbm_to_vmem [thread:$0]  %s23, 896, %s25, [#allocation3]
    $region5: #{tpu_custom_call.1} parent=1 // pred_fallthru
      _
    // Predicated region
    $region6: #{tpu_custom_call.1} parent=1 // pred_check
      _
    $region7: #{tpu_custom_call.1} parent=1 // pred_check_branch
      %29 = sbr.rel (0) target = $region9
    $region8: #{tpu_custom_call.1} parent=1 // pred_region
      %31 = vsyncadd [#allocation6], 0
      %s32 = sshll.u32 %s1, 4
      %s33 = int_to_ptr.hbm [resolvable:$true] %s32
      %s34 = sshll.u32 [#allocation5], 4
      %s35 = int_to_ptr.vmem [resolvable:$true] %s34
      %40 = dma.hbm_to_vmem [thread:$0]  %s33, 37632, %s35, [#allocation6], 384, 384, 24
    $region9: #{tpu_custom_call.1} parent=1 // pred_fallthru
      _
    // Predicated region
    $region10: #{tpu_custom_call.1} parent=1 // pred_check
      _
    $region11: #{tpu_custom_call.1} parent=1 // pred_check_branch
      %42 = sbr.rel (0) target = $region13
    $region12: #{tpu_custom_call.1} parent=1 // pred_region
      %44 = vsyncadd [#allocation6], 0
      %s46 = sshll.u32 %s2, 4
      %s47 = int_to_ptr.hbm [resolvable:$true] %s46
      %s48 = sshll.u32 [#allocation7], 4
      %s49 = int_to_ptr.vmem [resolvable:$true] %s48
      %51 = dma.hbm_to_vmem [thread:$0]  %s47, 48, %s49, [#allocation6]
    $region13: #{tpu_custom_call.1} parent=1 // pred_fallthru
      _
    // Predicated region
    $region14: #{tpu_custom_call.1} parent=1 // pred_check
      _
    $region15: #{tpu_custom_call.1} parent=1 // pred_check_branch
      %53 = sbr.rel (0) target = $region17
    $region16: #{tpu_custom_call.1} parent=1 // pred_region
      %55 = vsyncadd [#allocation9], 0
      %s56 = sshll.u32 %s3, 4
      %s57 = int_to_ptr.hbm [resolvable:$true] %s56
      %s58 = sshll.u32 [#allocation8], 4
      %s59 = int_to_ptr.vmem [resolvable:$true] %s58
      %64 = dma.hbm_to_vmem [thread:$0]  %s57, 12288, %s59, [#allocation9], 256, 256, 16
    $region17: #{tpu_custom_call.1} parent=1 // pred_fallthru
      _
    // Predicated region
    $region18: #{tpu_custom_call.1} parent=1 // pred_check
      _
    $region19: #{tpu_custom_call.1} parent=1 // pred_check_branch
      %66 = sbr.rel (0) target = $region21
    $region20: #{tpu_custom_call.1} parent=1 // pred_region
      %68 = vsyncadd [#allocation9], 0
      %s70 = sshll.u32 %s4, 4
      %s71 = int_to_ptr.hbm [resolvable:$true] %s70
      %s72 = sshll.u32 [#allocation10], 4
      %s73 = int_to_ptr.vmem [resolvable:$true] %s72
      %75 = dma.hbm_to_vmem [thread:$0]  %s71, 32, %s73, [#allocation9]
    $region21: #{tpu_custom_call.1} parent=1 // pred_fallthru
      _
    // Predicated region
    $region22: #{tpu_custom_call.1} parent=1 // pred_check
      _
    $region23: #{tpu_custom_call.1} parent=1 // pred_check_branch
      %77 = sbr.rel (0) target = $region25
    $region24: #{tpu_custom_call.1} parent=1 // pred_region
      %79 = vsyncadd [#allocation12], 0
      %s80 = sshll.u32 %s5, 4
      %s81 = int_to_ptr.hbm [resolvable:$true] %s80
      %s82 = sshll.u32 [#allocation11], 4
      %s83 = int_to_ptr.vmem [resolvable:$true] %s82
      %88 = dma.hbm_to_vmem [thread:$0]  %s81, 4096, %s83, [#allocation12], 128, 128, 8
    $region25: #{tpu_custom_call.1} parent=1 // pred_fallthru
      _
    // Predicated region
    $region26: #{tpu_custom_call.1} parent=1 // pred_check
      _
    $region27: #{tpu_custom_call.1} parent=1 // pred_check_branch
      %90 = sbr.rel (0) target = $region29
    $region28: #{tpu_custom_call.1} parent=1 // pred_region
      %92 = vsyncadd [#allocation12], 0
      %s94 = sshll.u32 %s6, 4
      %s95 = int_to_ptr.hbm [resolvable:$true] %s94
      %s96 = sshll.u32 [#allocation13], 4
      %s97 = int_to_ptr.vmem [resolvable:$true] %s96
      %99 = dma.hbm_to_vmem [thread:$0]  %s95, 16, %s97, [#allocation12]
    $region29: #{tpu_custom_call.1} parent=1 // pred_fallthru
      _
    // Predicated region
    $region30: #{tpu_custom_call.1} parent=1 // pred_check
      _
    $region31: #{tpu_custom_call.1} parent=1 // pred_check_branch
      %101 = sbr.rel (0) target = $region33
    $region32: #{tpu_custom_call.1} parent=1 // pred_region
      %103 = dma.done [#allocation3], 896
    $region33: #{tpu_custom_call.1} parent=1 // pred_fallthru
      _
    // Predicated region
    $region34: #{tpu_custom_call.1} parent=1 // pred_check
      _
    $region35: #{tpu_custom_call.1} parent=1 // pred_check_branch
      %105 = sbr.rel (0) target = $region37
    $region36: #{tpu_custom_call.1} parent=1 // pred_region
      %107 = dma.done [#allocation6], 37632
    $region37: #{tpu_custom_call.1} parent=1 // pred_fallthru
      _
    // Predicated region
    $region38: #{tpu_custom_call.1} parent=1 // pred_check
      _
    $region39: #{tpu_custom_call.1} parent=1 // pred_check_branch
      %109 = sbr.rel (0) target = $region41
    $region40: #{tpu_custom_call.1} parent=1 // pred_region
      %111 = dma.done [#allocation6], 48
    $region41: #{tpu_custom_call.1} parent=1 // pred_fallthru
      _
    // Predicated region
    $region42: #{tpu_custom_call.1} parent=1 // pred_check
      _
    $region43: #{tpu_custom_call.1} parent=1 // pred_check_branch
      %113 = sbr.rel (0) target = $region45
    $region44: #{tpu_custom_call.1} parent=1 // pred_region
      %115 = dma.done [#allocation9], 12288
    $region45: #{tpu_custom_call.1} parent=1 // pred_fallthru
      _
    // Predicated region
    $region46: #{tpu_custom_call.1} parent=1 // pred_check
      _
    $region47: #{tpu_custom_call.1} parent=1 // pred_check_branch
      %117 = sbr.rel (0) target = $region49
    $region48: #{tpu_custom_call.1} parent=1 // pred_region
      %119 = dma.done [#allocation9], 32
    $region49: #{tpu_custom_call.1} parent=1 // pred_fallthru
      _
    // Predicated region
    $region50: #{tpu_custom_call.1} parent=1 // pred_check
      _
    $region51: #{tpu_custom_call.1} parent=1 // pred_check_branch
      %121 = sbr.rel (0) target = $region53
    $region52: #{tpu_custom_call.1} parent=1 // pred_region
      %123 = dma.done [#allocation12], 4096
    $region53: #{tpu_custom_call.1} parent=1 // pred_fallthru
      _
    // Predicated region
    $region54: #{tpu_custom_call.1} parent=1 // pred_check
      _
    $region55: #{tpu_custom_call.1} parent=1 // pred_check_branch
      %125 = sbr.rel (0) target = $region57
    $region56: #{tpu_custom_call.1} parent=1 // pred_region
      %127 = dma.done [#allocation12], 16
    $region57: #{tpu_custom_call.1} parent=1 // pred_fallthru
      _
    %v128 = vld [vmem:[#allocation2] sm:$0xff]
    %v129 = vld [vmem:[#allocation2 + $0x8] sm:$0xff]
    %v130 = vld [vmem:[#allocation2 + $0x10] sm:$0xff]
    %v131 = vld [vmem:[#allocation2 + $0x18] sm:$0xff]
    %v132 = vld [vmem:[#allocation2 + $0x20] sm:$0xff]
    %v133 = vld [vmem:[#allocation2 + $0x28] sm:$0xff]
    %v134 = vld [vmem:[#allocation2 + $0x30] sm:$0xff]
    %v135 = vld [vmem:[#allocation5] sm:$0xff]
    %v136 = vld [vmem:[#allocation5 + $0x8] sm:$0xff]
    %v137 = vld [vmem:[#allocation5 + $0x10] sm:$0xff]
    %v138 = vld [vmem:[#allocation5 + $0x18] sm:$0xff]
    %v139 = vld [vmem:[#allocation5 + $0x20] sm:$0xff]
    %v140 = vld [vmem:[#allocation5 + $0x28] sm:$0xff]
    %v141 = vld [vmem:[#allocation5 + $0x30] sm:$0xff]
    %v142 = vld [vmem:[#allocation5 + $0x38] sm:$0xff]
    %v143 = vld [vmem:[#allocation5 + $0x40] sm:$0xff]
    %v144 = vld [vmem:[#allocation5 + $0x48] sm:$0xff]
    %v145 = vld [vmem:[#allocation5 + $0x50] sm:$0xff]
    %v146 = vld [vmem:[#allocation5 + $0x58] sm:$0xff]
    %v147 = vld [vmem:[#allocation5 + $0x60] sm:$0xff]
    %v148 = vld [vmem:[#allocation5 + $0x68] sm:$0xff]
    %v149 = vld [vmem:[#allocation5 + $0x70] sm:$0xff]
    %v150 = vld [vmem:[#allocation5 + $0x78] sm:$0xff]
    %v151 = vld [vmem:[#allocation5 + $0x80] sm:$0xff]
    %v152 = vld [vmem:[#allocation5 + $0x88] sm:$0xff]
    %v153 = vld [vmem:[#allocation5 + $0x90] sm:$0xff]
    %v154 = vld [vmem:[#allocation5 + $0x98] sm:$0xff]
    %v155 = vld [vmem:[#allocation5 + $0xa0] sm:$0xff]
    %v156 = vld [vmem:[#allocation5 + $0xa8] sm:$0xff]
    %v157 = vld [vmem:[#allocation5 + $0xb0] sm:$0xff]
    %v158 = vld [vmem:[#allocation5 + $0xb8] sm:$0xff]
    %v159 = vld [vmem:[#allocation5 + $0xc0] sm:$0xff]
    %v160 = vld [vmem:[#allocation5 + $0xc8] sm:$0xff]
    %v161 = vld [vmem:[#allocation5 + $0xd0] sm:$0xff]
    %v162 = vld [vmem:[#allocation5 + $0xd8] sm:$0xff]
    %v163 = vld [vmem:[#allocation5 + $0xe0] sm:$0xff]
    %v164 = vld [vmem:[#allocation5 + $0xe8] sm:$0xff]
    %v165 = vld [vmem:[#allocation5 + $0xf0] sm:$0xff]
    %v166 = vld [vmem:[#allocation5 + $0xf8] sm:$0xff]
    %v167 = vld [vmem:[#allocation5 + $0x100] sm:$0xff]
    %v168 = vld [vmem:[#allocation5 + $0x108] sm:$0xff]
    %v169 = vld [vmem:[#allocation5 + $0x110] sm:$0xff]
    %v170 = vld [vmem:[#allocation5 + $0x118] sm:$0xff]
    %v171 = vld [vmem:[#allocation5 + $0x120] sm:$0xff]
    %v172 = vld [vmem:[#allocation5 + $0x128] sm:$0xff]
    %v173 = vld [vmem:[#allocation5 + $0x130] sm:$0xff]
    %v174 = vld [vmem:[#allocation5 + $0x138] sm:$0xff]
    %v175 = vld [vmem:[#allocation5 + $0x140] sm:$0xff]
    %v176 = vld [vmem:[#allocation5 + $0x148] sm:$0xff]
    %v177 = vld [vmem:[#allocation5 + $0x150] sm:$0xff]
    %v178 = vld [vmem:[#allocation5 + $0x158] sm:$0xff]
    %v179 = vld [vmem:[#allocation5 + $0x160] sm:$0xff]
    %v180 = vld [vmem:[#allocation5 + $0x168] sm:$0xff]
    %v181 = vld [vmem:[#allocation5 + $0x170] sm:$0xff]
    %v182 = vld [vmem:[#allocation5 + $0x178] sm:$0xff]
    %v183 = vld [vmem:[#allocation5 + $0x180] sm:$0xff]
    %v184 = vld [vmem:[#allocation5 + $0x188] sm:$0xff]
    %v185 = vld [vmem:[#allocation5 + $0x190] sm:$0xff]
    %v186 = vld [vmem:[#allocation5 + $0x198] sm:$0xff]
    %v187 = vld [vmem:[#allocation5 + $0x1a0] sm:$0xff]
    %v188 = vld [vmem:[#allocation5 + $0x1a8] sm:$0xff]
    %v189 = vld [vmem:[#allocation5 + $0x1b0] sm:$0xff]
    %v190 = vld [vmem:[#allocation5 + $0x1b8] sm:$0xff]
    %v191 = vld [vmem:[#allocation5 + $0x1c0] sm:$0xff]
    %v192 = vld [vmem:[#allocation5 + $0x1c8] sm:$0xff]
    %v193 = vld [vmem:[#allocation5 + $0x1d0] sm:$0xff]
    %v194 = vld [vmem:[#allocation5 + $0x1d8] sm:$0xff]
    %v195 = vld [vmem:[#allocation5 + $0x1e0] sm:$0xff]
    %v196 = vld [vmem:[#allocation5 + $0x1e8] sm:$0xff]
    %v197 = vld [vmem:[#allocation5 + $0x1f0] sm:$0xff]
    %v198 = vld [vmem:[#allocation5 + $0x1f8] sm:$0xff]
    %v199 = vld [vmem:[#allocation5 + $0x200] sm:$0xff]
    %v200 = vld [vmem:[#allocation5 + $0x208] sm:$0xff]
    %v201 = vld [vmem:[#allocation5 + $0x210] sm:$0xff]
    %v202 = vld [vmem:[#allocation5 + $0x218] sm:$0xff]
    %v203 = vld [vmem:[#allocation5 + $0x220] sm:$0xff]
    %v204 = vld [vmem:[#allocation5 + $0x228] sm:$0xff]
    %v205 = vld [vmem:[#allocation5 + $0x230] sm:$0xff]
    %v206 = vld [vmem:[#allocation5 + $0x238] sm:$0xff]
    %v207 = vld [vmem:[#allocation5 + $0x240] sm:$0xff]
    %v208 = vld [vmem:[#allocation5 + $0x248] sm:$0xff]
    %v209 = vld [vmem:[#allocation5 + $0x250] sm:$0xff]
    %v210 = vld [vmem:[#allocation5 + $0x258] sm:$0xff]
    %v211 = vld [vmem:[#allocation5 + $0x260] sm:$0xff]
    %v212 = vld [vmem:[#allocation5 + $0x268] sm:$0xff]
    %v213 = vld [vmem:[#allocation5 + $0x270] sm:$0xff]
    %v214 = vld [vmem:[#allocation5 + $0x278] sm:$0xff]
    %v215 = vld [vmem:[#allocation5 + $0x280] sm:$0xff]
    %v216 = vld [vmem:[#allocation5 + $0x288] sm:$0xff]
    %v217 = vld [vmem:[#allocation5 + $0x290] sm:$0xff]
    %v218 = vld [vmem:[#allocation5 + $0x298] sm:$0xff]
    %v219 = vld [vmem:[#allocation5 + $0x2a0] sm:$0xff]
    %v220 = vld [vmem:[#allocation5 + $0x2a8] sm:$0xff]
    %v221 = vld [vmem:[#allocation5 + $0x2b0] sm:$0xff]
    %v222 = vld [vmem:[#allocation5 + $0x2b8] sm:$0xff]
    %v223 = vld [vmem:[#allocation5 + $0x2c0] sm:$0xff]
    %v224 = vld [vmem:[#allocation5 + $0x2c8] sm:$0xff]
    %v225 = vld [vmem:[#allocation5 + $0x2d0] sm:$0xff]
    %v226 = vld [vmem:[#allocation5 + $0x2d8] sm:$0xff]
    %v227 = vld [vmem:[#allocation5 + $0x2e0] sm:$0xff]
    %v228 = vld [vmem:[#allocation5 + $0x2e8] sm:$0xff]
    %v229 = vld [vmem:[#allocation5 + $0x2f0] sm:$0xff]
    %v230 = vld [vmem:[#allocation5 + $0x2f8] sm:$0xff]
    %v231 = vld [vmem:[#allocation5 + $0x300] sm:$0xff]
    %v232 = vld [vmem:[#allocation5 + $0x308] sm:$0xff]
    %v233 = vld [vmem:[#allocation5 + $0x310] sm:$0xff]
    %v234 = vld [vmem:[#allocation5 + $0x318] sm:$0xff]
    %v235 = vld [vmem:[#allocation5 + $0x320] sm:$0xff]
    %v236 = vld [vmem:[#allocation5 + $0x328] sm:$0xff]
    %v237 = vld [vmem:[#allocation5 + $0x330] sm:$0xff]
    %v238 = vld [vmem:[#allocation5 + $0x338] sm:$0xff]
    %v239 = vld [vmem:[#allocation5 + $0x340] sm:$0xff]
    %v240 = vld [vmem:[#allocation5 + $0x348] sm:$0xff]
    %v241 = vld [vmem:[#allocation5 + $0x350] sm:$0xff]
    %v242 = vld [vmem:[#allocation5 + $0x358] sm:$0xff]
    %v243 = vld [vmem:[#allocation5 + $0x360] sm:$0xff]
    %v244 = vld [vmem:[#allocation5 + $0x368] sm:$0xff]
    %v245 = vld [vmem:[#allocation5 + $0x370] sm:$0xff]
    %v246 = vld [vmem:[#allocation5 + $0x378] sm:$0xff]
    %v247 = vld [vmem:[#allocation5 + $0x380] sm:$0xff]
    %v248 = vld [vmem:[#allocation5 + $0x388] sm:$0xff]
    %v249 = vld [vmem:[#allocation5 + $0x390] sm:$0xff]
    %v250 = vld [vmem:[#allocation5 + $0x398] sm:$0xff]
    %v251 = vld [vmem:[#allocation5 + $0x3a0] sm:$0xff]
    %v252 = vld [vmem:[#allocation5 + $0x3a8] sm:$0xff]
    %v253 = vld [vmem:[#allocation5 + $0x3b0] sm:$0xff]
    %v254 = vld [vmem:[#allocation5 + $0x3b8] sm:$0xff]
    %v255 = vld [vmem:[#allocation5 + $0x3c0] sm:$0xff]
    %v256 = vld [vmem:[#allocation5 + $0x3c8] sm:$0xff]
    %v257 = vld [vmem:[#allocation5 + $0x3d0] sm:$0xff]
    %v258 = vld [vmem:[#allocation5 + $0x3d8] sm:$0xff]
    %v259 = vld [vmem:[#allocation5 + $0x3e0] sm:$0xff]
    %v260 = vld [vmem:[#allocation5 + $0x3e8] sm:$0xff]
    %v261 = vld [vmem:[#allocation5 + $0x3f0] sm:$0xff]
    %v262 = vld [vmem:[#allocation5 + $0x3f8] sm:$0xff]
    %v263 = vld [vmem:[#allocation5 + $0x400] sm:$0xff]
    %v264 = vld [vmem:[#allocation5 + $0x408] sm:$0xff]
    %v265 = vld [vmem:[#allocation5 + $0x410] sm:$0xff]
    %v266 = vld [vmem:[#allocation5 + $0x418] sm:$0xff]
    %v267 = vld [vmem:[#allocation5 + $0x420] sm:$0xff]
    %v268 = vld [vmem:[#allocation5 + $0x428] sm:$0xff]
    %v269 = vld [vmem:[#allocation5 + $0x430] sm:$0xff]
    %v270 = vld [vmem:[#allocation5 + $0x438] sm:$0xff]
    %v271 = vld [vmem:[#allocation5 + $0x440] sm:$0xff]
    %v272 = vld [vmem:[#allocation5 + $0x448] sm:$0xff]
    %v273 = vld [vmem:[#allocation5 + $0x450] sm:$0xff]
    %v274 = vld [vmem:[#allocation5 + $0x458] sm:$0xff]
    %v275 = vld [vmem:[#allocation5 + $0x460] sm:$0xff]
    %v276 = vld [vmem:[#allocation5 + $0x468] sm:$0xff]
    %v277 = vld [vmem:[#allocation5 + $0x470] sm:$0xff]
    %v278 = vld [vmem:[#allocation5 + $0x478] sm:$0xff]
    %v279 = vld [vmem:[#allocation5 + $0x480] sm:$0xff]
    %v280 = vld [vmem:[#allocation5 + $0x488] sm:$0xff]
    %v281 = vld [vmem:[#allocation5 + $0x490] sm:$0xff]
    %v282 = vld [vmem:[#allocation5 + $0x498] sm:$0xff]
    %v283 = vld [vmem:[#allocation5 + $0x4a0] sm:$0xff]
    %v284 = vld [vmem:[#allocation5 + $0x4a8] sm:$0xff]
    %v285 = vld [vmem:[#allocation5 + $0x4b0] sm:$0xff]
    %v286 = vld [vmem:[#allocation5 + $0x4b8] sm:$0xff]
    %v287 = vld [vmem:[#allocation5 + $0x4c0] sm:$0xff]
    %v288 = vld [vmem:[#allocation5 + $0x4c8] sm:$0xff]
    %v289 = vld [vmem:[#allocation5 + $0x4d0] sm:$0xff]
    %v290 = vld [vmem:[#allocation5 + $0x4d8] sm:$0xff]
    %v291 = vld [vmem:[#allocation5 + $0x4e0] sm:$0xff]
    %v292 = vld [vmem:[#allocation5 + $0x4e8] sm:$0xff]
    %v293 = vld [vmem:[#allocation5 + $0x4f0] sm:$0xff]
    %v294 = vld [vmem:[#allocation5 + $0x4f8] sm:$0xff]
    %v295 = vld [vmem:[#allocation5 + $0x500] sm:$0xff]
    %v296 = vld [vmem:[#allocation5 + $0x508] sm:$0xff]
    %v297 = vld [vmem:[#allocation5 + $0x510] sm:$0xff]
    %v298 = vld [vmem:[#allocation5 + $0x518] sm:$0xff]
    %v299 = vld [vmem:[#allocation5 + $0x520] sm:$0xff]
    %v300 = vld [vmem:[#allocation5 + $0x528] sm:$0xff]
    %v301 = vld [vmem:[#allocation5 + $0x530] sm:$0xff]
    %v302 = vld [vmem:[#allocation5 + $0x538] sm:$0xff]
    %v303 = vld [vmem:[#allocation5 + $0x540] sm:$0xff]
    %v304 = vld [vmem:[#allocation5 + $0x548] sm:$0xff]
    %v305 = vld [vmem:[#allocation5 + $0x550] sm:$0xff]
    %v306 = vld [vmem:[#allocation5 + $0x558] sm:$0xff]
    %v307 = vld [vmem:[#allocation5 + $0x560] sm:$0xff]
    %v308 = vld [vmem:[#allocation5 + $0x568] sm:$0xff]
    %v309 = vld [vmem:[#allocation5 + $0x570] sm:$0xff]
    %v310 = vld [vmem:[#allocation5 + $0x578] sm:$0xff]
    %v311 = vld [vmem:[#allocation5 + $0x580] sm:$0xff]
    %v312 = vld [vmem:[#allocation5 + $0x588] sm:$0xff]
    %v313 = vld [vmem:[#allocation5 + $0x590] sm:$0xff]
    %v314 = vld [vmem:[#allocation5 + $0x598] sm:$0xff]
    %v315 = vld [vmem:[#allocation5 + $0x5a0] sm:$0xff]
    %v316 = vld [vmem:[#allocation5 + $0x5a8] sm:$0xff]
    %v317 = vld [vmem:[#allocation5 + $0x5b0] sm:$0xff]
    %v318 = vld [vmem:[#allocation5 + $0x5b8] sm:$0xff]
    %v319 = vld [vmem:[#allocation5 + $0x5c0] sm:$0xff]
    %v320 = vld [vmem:[#allocation5 + $0x5c8] sm:$0xff]
    %v321 = vld [vmem:[#allocation5 + $0x5d0] sm:$0xff]
    %v322 = vld [vmem:[#allocation5 + $0x5d8] sm:$0xff]
    %v323 = vld [vmem:[#allocation5 + $0x5e0] sm:$0xff]
    %v324 = vld [vmem:[#allocation5 + $0x5e8] sm:$0xff]
    %v325 = vld [vmem:[#allocation5 + $0x5f0] sm:$0xff]
    %v326 = vld [vmem:[#allocation5 + $0x5f8] sm:$0xff]
    %v327 = vld [vmem:[#allocation5 + $0x600] sm:$0xff]
    %v328 = vld [vmem:[#allocation5 + $0x608] sm:$0xff]
    %v329 = vld [vmem:[#allocation5 + $0x610] sm:$0xff]
    %v330 = vld [vmem:[#allocation5 + $0x618] sm:$0xff]
    %v331 = vld [vmem:[#allocation5 + $0x620] sm:$0xff]
    %v332 = vld [vmem:[#allocation5 + $0x628] sm:$0xff]
    %v333 = vld [vmem:[#allocation5 + $0x630] sm:$0xff]
    %v334 = vld [vmem:[#allocation5 + $0x638] sm:$0xff]
    %v335 = vld [vmem:[#allocation5 + $0x640] sm:$0xff]
    %v336 = vld [vmem:[#allocation5 + $0x648] sm:$0xff]
    %v337 = vld [vmem:[#allocation5 + $0x650] sm:$0xff]
    %v338 = vld [vmem:[#allocation5 + $0x658] sm:$0xff]
    %v339 = vld [vmem:[#allocation5 + $0x660] sm:$0xff]
    %v340 = vld [vmem:[#allocation5 + $0x668] sm:$0xff]
    %v341 = vld [vmem:[#allocation5 + $0x670] sm:$0xff]
    %v342 = vld [vmem:[#allocation5 + $0x678] sm:$0xff]
    %v343 = vld [vmem:[#allocation5 + $0x680] sm:$0xff]
    %v344 = vld [vmem:[#allocation5 + $0x688] sm:$0xff]
    %v345 = vld [vmem:[#allocation5 + $0x690] sm:$0xff]
    %v346 = vld [vmem:[#allocation5 + $0x698] sm:$0xff]
    %v347 = vld [vmem:[#allocation5 + $0x6a0] sm:$0xff]
    %v348 = vld [vmem:[#allocation5 + $0x6a8] sm:$0xff]
    %v349 = vld [vmem:[#allocation5 + $0x6b0] sm:$0xff]
    %v350 = vld [vmem:[#allocation5 + $0x6b8] sm:$0xff]
    %v351 = vld [vmem:[#allocation5 + $0x6c0] sm:$0xff]
    %v352 = vld [vmem:[#allocation5 + $0x6c8] sm:$0xff]
    %v353 = vld [vmem:[#allocation5 + $0x6d0] sm:$0xff]
    %v354 = vld [vmem:[#allocation5 + $0x6d8] sm:$0xff]
    %v355 = vld [vmem:[#allocation5 + $0x6e0] sm:$0xff]
    %v356 = vld [vmem:[#allocation5 + $0x6e8] sm:$0xff]
    %v357 = vld [vmem:[#allocation5 + $0x6f0] sm:$0xff]
    %v358 = vld [vmem:[#allocation5 + $0x6f8] sm:$0xff]
    %v359 = vld [vmem:[#allocation5 + $0x700] sm:$0xff]
    %v360 = vld [vmem:[#allocation5 + $0x708] sm:$0xff]
    %v361 = vld [vmem:[#allocation5 + $0x710] sm:$0xff]
    %v362 = vld [vmem:[#allocation5 + $0x718] sm:$0xff]
    %v363 = vld [vmem:[#allocation5 + $0x720] sm:$0xff]
    %v364 = vld [vmem:[#allocation5 + $0x728] sm:$0xff]
    %v365 = vld [vmem:[#allocation5 + $0x730] sm:$0xff]
    %v366 = vld [vmem:[#allocation5 + $0x738] sm:$0xff]
    %v367 = vld [vmem:[#allocation5 + $0x740] sm:$0xff]
    %v368 = vld [vmem:[#allocation5 + $0x748] sm:$0xff]
    %v369 = vld [vmem:[#allocation5 + $0x750] sm:$0xff]
    %v370 = vld [vmem:[#allocation5 + $0x758] sm:$0xff]
    %v371 = vld [vmem:[#allocation5 + $0x760] sm:$0xff]
    %v372 = vld [vmem:[#allocation5 + $0x768] sm:$0xff]
    %v373 = vld [vmem:[#allocation5 + $0x770] sm:$0xff]
    %v374 = vld [vmem:[#allocation5 + $0x778] sm:$0xff]
    %v375 = vld [vmem:[#allocation5 + $0x780] sm:$0xff]
    %v376 = vld [vmem:[#allocation5 + $0x788] sm:$0xff]
    %v377 = vld [vmem:[#allocation5 + $0x790] sm:$0xff]
    %v378 = vld [vmem:[#allocation5 + $0x798] sm:$0xff]
    %v379 = vld [vmem:[#allocation5 + $0x7a0] sm:$0xff]
    %v380 = vld [vmem:[#allocation5 + $0x7a8] sm:$0xff]
    %v381 = vld [vmem:[#allocation5 + $0x7b0] sm:$0xff]
    %v382 = vld [vmem:[#allocation5 + $0x7b8] sm:$0xff]
    %v383 = vld [vmem:[#allocation5 + $0x7c0] sm:$0xff]
    %v384 = vld [vmem:[#allocation5 + $0x7c8] sm:$0xff]
    %v385 = vld [vmem:[#allocation5 + $0x7d0] sm:$0xff]
    %v386 = vld [vmem:[#allocation5 + $0x7d8] sm:$0xff]
    %v387 = vld [vmem:[#allocation5 + $0x7e0] sm:$0xff]
    %v388 = vld [vmem:[#allocation5 + $0x7e8] sm:$0xff]
    %v389 = vld [vmem:[#allocation5 + $0x7f0] sm:$0xff]
    %v390 = vld [vmem:[#allocation5 + $0x7f8] sm:$0xff]
    %v391 = vld [vmem:[#allocation5 + $0x800] sm:$0xff]
    %v392 = vld [vmem:[#allocation5 + $0x808] sm:$0xff]
    %v393 = vld [vmem:[#allocation5 + $0x810] sm:$0xff]
    %v394 = vld [vmem:[#allocation5 + $0x818] sm:$0xff]
    %v395 = vld [vmem:[#allocation5 + $0x820] sm:$0xff]
    %v396 = vld [vmem:[#allocation5 + $0x828] sm:$0xff]
    %v397 = vld [vmem:[#allocation5 + $0x830] sm:$0xff]
    %v398 = vld [vmem:[#allocation5 + $0x838] sm:$0xff]
    %v399 = vld [vmem:[#allocation5 + $0x840] sm:$0xff]
    %v400 = vld [vmem:[#allocation5 + $0x848] sm:$0xff]
    %v401 = vld [vmem:[#allocation5 + $0x850] sm:$0xff]
    %v402 = vld [vmem:[#allocation5 + $0x858] sm:$0xff]
    %v403 = vld [vmem:[#allocation5 + $0x860] sm:$0xff]
    %v404 = vld [vmem:[#allocation5 + $0x868] sm:$0xff]
    %v405 = vld [vmem:[#allocation5 + $0x870] sm:$0xff]
    %v406 = vld [vmem:[#allocation5 + $0x878] sm:$0xff]
    %v407 = vld [vmem:[#allocation5 + $0x880] sm:$0xff]
    %v408 = vld [vmem:[#allocation5 + $0x888] sm:$0xff]
    %v409 = vld [vmem:[#allocation5 + $0x890] sm:$0xff]
    %v410 = vld [vmem:[#allocation5 + $0x898] sm:$0xff]
    %v411 = vld [vmem:[#allocation5 + $0x8a0] sm:$0xff]
    %v412 = vld [vmem:[#allocation5 + $0x8a8] sm:$0xff]
    %v413 = vld [vmem:[#allocation5 + $0x8b0] sm:$0xff]
    %v414 = vld [vmem:[#allocation5 + $0x8b8] sm:$0xff]
    %v415 = vld [vmem:[#allocation5 + $0x8c0] sm:$0xff]
    %v416 = vld [vmem:[#allocation5 + $0x8c8] sm:$0xff]
    %v417 = vld [vmem:[#allocation5 + $0x8d0] sm:$0xff]
    %v418 = vld [vmem:[#allocation5 + $0x8d8] sm:$0xff]
    %v419 = vld [vmem:[#allocation5 + $0x8e0] sm:$0xff]
    %v420 = vld [vmem:[#allocation5 + $0x8e8] sm:$0xff]
    %v421 = vld [vmem:[#allocation5 + $0x8f0] sm:$0xff]
    %v422 = vld [vmem:[#allocation5 + $0x8f8] sm:$0xff]
    %v423 = vld [vmem:[#allocation5 + $0x900] sm:$0xff]
    %v424 = vld [vmem:[#allocation5 + $0x908] sm:$0xff]
    %v425 = vld [vmem:[#allocation5 + $0x910] sm:$0xff]
    %v426 = vld [vmem:[#allocation5 + $0x918] sm:$0xff]
    %v427 = vld [vmem:[#allocation5 + $0x920] sm:$0xff]
    %v428 = vld [vmem:[#allocation5 + $0x928] sm:$0xff]
    %v429 = vld [vmem:[#allocation7] sm:$0x7]
    %v431 = vperm.slane %v429, 0
    %v432 = vperm.slane %v429, 1
    %v433 = vperm.slane %v429, 2
    %vm437 = vcmask 130048
    %v439 = vsel %vm437, %v134, 0
    %441 = vmatpush.msra.mxu0 %v180
    %442 = vmatpush.msra.mxu0 %v177
    %443 = vmatpush.msra.mxu0 %v174
    %444 = vmatpush.msra.mxu0 %v171
    %445 = vmatpush.msra.mxu0 %v168
    %446 = vmatpush.msra.mxu0 %v165
    %447 = vmatpush.msra.mxu0 %v162
    %448 = vmatpush.msra.mxu0 %v159
    %449 = vmatpush.msra.mxu0 %v156
    %450 = vmatpush.msra.mxu0 %v153
    %451 = vmatpush.msra.mxu0 %v150
    %452 = vmatpush.msra.mxu0 %v147
    %453 = vmatpush.msra.mxu0 %v144
    %454 = vmatpush.msra.mxu0 %v141
    %455 = vmatpush.msra.mxu0 %v138
    %456 = vmatpush.msra.mxu0 %v135
    %457 = vmatmul.f32.gmra.mxu0 %v128
    %v458 = vpop.f32.mrf.mxu0
    %v459 = vadd.f32 %v431, %v458
    %460 = vdwg.mxu0
    %461 = vmatpush.msra.mxu0 %v228
    %462 = vmatpush.msra.mxu0 %v225
    %463 = vmatpush.msra.mxu0 %v222
    %464 = vmatpush.msra.mxu0 %v219
    %465 = vmatpush.msra.mxu0 %v216
    %466 = vmatpush.msra.mxu0 %v213
    %467 = vmatpush.msra.mxu0 %v210
    %468 = vmatpush.msra.mxu0 %v207
    %469 = vmatpush.msra.mxu0 %v204
    %470 = vmatpush.msra.mxu0 %v201
    %471 = vmatpush.msra.mxu0 %v198
    %472 = vmatpush.msra.mxu0 %v195
    %473 = vmatpush.msra.mxu0 %v192
    %474 = vmatpush.msra.mxu0 %v189
    %475 = vmatpush.msra.mxu0 %v186
    %476 = vmatpush.msra.mxu0 %v183
    %477 = vmatmul.f32.gmra.mxu0 %v129
    %v478 = vpop.f32.mrf.mxu0
    %v479 = vadd.f32 %v459, %v478
    %480 = vdwg.mxu0
    %481 = vmatpush.msra.mxu0 %v276
    %482 = vmatpush.msra.mxu0 %v273
    %483 = vmatpush.msra.mxu0 %v270
    %484 = vmatpush.msra.mxu0 %v267
    %485 = vmatpush.msra.mxu0 %v264
    %486 = vmatpush.msra.mxu0 %v261
    %487 = vmatpush.msra.mxu0 %v258
    %488 = vmatpush.msra.mxu0 %v255
    %489 = vmatpush.msra.mxu0 %v252
    %490 = vmatpush.msra.mxu0 %v249
    %491 = vmatpush.msra.mxu0 %v246
    %492 = vmatpush.msra.mxu0 %v243
    %493 = vmatpush.msra.mxu0 %v240
    %494 = vmatpush.msra.mxu0 %v237
    %495 = vmatpush.msra.mxu0 %v234
    %496 = vmatpush.msra.mxu0 %v231
    %497 = vmatmul.f32.gmra.mxu0 %v130
    %v498 = vpop.f32.mrf.mxu0
    %v499 = vadd.f32 %v479, %v498
    %500 = vdwg.mxu0
    %501 = vmatpush.msra.mxu0 %v324
    %502 = vmatpush.msra.mxu0 %v321
    %503 = vmatpush.msra.mxu0 %v318
    %504 = vmatpush.msra.mxu0 %v315
    %505 = vmatpush.msra.mxu0 %v312
    %506 = vmatpush.msra.mxu0 %v309
    %507 = vmatpush.msra.mxu0 %v306
    %508 = vmatpush.msra.mxu0 %v303
    %509 = vmatpush.msra.mxu0 %v300
    %510 = vmatpush.msra.mxu0 %v297
    %511 = vmatpush.msra.mxu0 %v294
    %512 = vmatpush.msra.mxu0 %v291
    %513 = vmatpush.msra.mxu0 %v288
    %514 = vmatpush.msra.mxu0 %v285
    %515 = vmatpush.msra.mxu0 %v282
    %516 = vmatpush.msra.mxu0 %v279
    %517 = vmatmul.f32.gmra.mxu0 %v131
    %v518 = vpop.f32.mrf.mxu0
    %v519 = vadd.f32 %v499, %v518
    %520 = vdwg.mxu0
    %521 = vmatpush.msra.mxu0 %v372
    %522 = vmatpush.msra.mxu0 %v369
    %523 = vmatpush.msra.mxu0 %v366
    %524 = vmatpush.msra.mxu0 %v363
    %525 = vmatpush.msra.mxu0 %v360
    %526 = vmatpush.msra.mxu0 %v357
    %527 = vmatpush.msra.mxu0 %v354
    %528 = vmatpush.msra.mxu0 %v351
    %529 = vmatpush.msra.mxu0 %v348
    %530 = vmatpush.msra.mxu0 %v345
    %531 = vmatpush.msra.mxu0 %v342
    %532 = vmatpush.msra.mxu0 %v339
    %533 = vmatpush.msra.mxu0 %v336
    %534 = vmatpush.msra.mxu0 %v333
    %535 = vmatpush.msra.mxu0 %v330
    %536 = vmatpush.msra.mxu0 %v327
    %537 = vmatmul.f32.gmra.mxu0 %v132
    %v538 = vpop.f32.mrf.mxu0
    %v539 = vadd.f32 %v519, %v538
    %540 = vdwg.mxu0
    %541 = vmatpush.msra.mxu0 %v420
    %542 = vmatpush.msra.mxu0 %v417
    %543 = vmatpush.msra.mxu0 %v414
    %544 = vmatpush.msra.mxu0 %v411
    %545 = vmatpush.msra.mxu0 %v408
    %546 = vmatpush.msra.mxu0 %v405
    %547 = vmatpush.msra.mxu0 %v402
    %548 = vmatpush.msra.mxu0 %v399
    %549 = vmatpush.msra.mxu0 %v396
    %550 = vmatpush.msra.mxu0 %v393
    %551 = vmatpush.msra.mxu0 %v390
    %552 = vmatpush.msra.mxu0 %v387
    %553 = vmatpush.msra.mxu0 %v384
    %554 = vmatpush.msra.mxu0 %v381
    %555 = vmatpush.msra.mxu0 %v378
    %556 = vmatpush.msra.mxu0 %v375
    %557 = vmatmul.f32.gmra.mxu0 %v133
    %v558 = vpop.f32.mrf.mxu0
    %v559 = vadd.f32 %v539, %v558
    %560 = vdwg.mxu0
    %561 = vmatpush.msra.mxu0 0.0
    %562 = vmatpush.msra.mxu0 0.0
    %563 = vmatpush.msra.mxu0 0.0
    %564 = vmatpush.msra.mxu0 0.0
    %565 = vmatpush.msra.mxu0 0.0
    %566 = vmatpush.msra.mxu0 0.0
    %567 = vmatpush.msra.mxu0 0.0
    %568 = vmatpush.msra.mxu0 0.0
    %569 = vmatpush.msra.mxu0 0.0
    %570 = vmatpush.msra.mxu0 0.0
    %571 = vmatpush.msra.mxu0 0.0
    %572 = vmatpush.msra.mxu0 0.0
    %573 = vmatpush.msra.mxu0 0.0
    %574 = vmatpush.msra.mxu0 0.0
    %575 = vmatpush.msra.mxu0 %v426
    %576 = vmatpush.msra.mxu0 %v423
    %577 = vmatmul.f32.gmra.mxu0 %v439
    %v578 = vpop.f32.mrf.mxu0
    %v579 = vadd.f32 %v559, %v578
    %580 = vdwg.mxu0
    %581 = vmatpush.msra.mxu0 %v181
    %582 = vmatpush.msra.mxu0 %v178
    %583 = vmatpush.msra.mxu0 %v175
    %584 = vmatpush.msra.mxu0 %v172
    %585 = vmatpush.msra.mxu0 %v169
    %586 = vmatpush.msra.mxu0 %v166
    %587 = vmatpush.msra.mxu0 %v163
    %588 = vmatpush.msra.mxu0 %v160
    %589 = vmatpush.msra.mxu0 %v157
    %590 = vmatpush.msra.mxu0 %v154
    %591 = vmatpush.msra.mxu0 %v151
    %592 = vmatpush.msra.mxu0 %v148
    %593 = vmatpush.msra.mxu0 %v145
    %594 = vmatpush.msra.mxu0 %v142
    %595 = vmatpush.msra.mxu0 %v139
    %596 = vmatpush.msra.mxu0 %v136
    %597 = vmatmul.f32.gmra.mxu0 %v128
    %v598 = vpop.f32.mrf.mxu0
    %v599 = vadd.f32 %v432, %v598
    %600 = vdwg.mxu0
    %601 = vmatpush.msra.mxu0 %v229
    %602 = vmatpush.msra.mxu0 %v226
    %603 = vmatpush.msra.mxu0 %v223
    %604 = vmatpush.msra.mxu0 %v220
    %605 = vmatpush.msra.mxu0 %v217
    %606 = vmatpush.msra.mxu0 %v214
    %607 = vmatpush.msra.mxu0 %v211
    %608 = vmatpush.msra.mxu0 %v208
    %609 = vmatpush.msra.mxu0 %v205
    %610 = vmatpush.msra.mxu0 %v202
    %611 = vmatpush.msra.mxu0 %v199
    %612 = vmatpush.msra.mxu0 %v196
    %613 = vmatpush.msra.mxu0 %v193
    %614 = vmatpush.msra.mxu0 %v190
    %615 = vmatpush.msra.mxu0 %v187
    %616 = vmatpush.msra.mxu0 %v184
    %617 = vmatmul.f32.gmra.mxu0 %v129
    %v618 = vpop.f32.mrf.mxu0
    %v619 = vadd.f32 %v599, %v618
    %620 = vdwg.mxu0
    %621 = vmatpush.msra.mxu0 %v277
    %622 = vmatpush.msra.mxu0 %v274
    %623 = vmatpush.msra.mxu0 %v271
    %624 = vmatpush.msra.mxu0 %v268
    %625 = vmatpush.msra.mxu0 %v265
    %626 = vmatpush.msra.mxu0 %v262
    %627 = vmatpush.msra.mxu0 %v259
    %628 = vmatpush.msra.mxu0 %v256
    %629 = vmatpush.msra.mxu0 %v253
    %630 = vmatpush.msra.mxu0 %v250
    %631 = vmatpush.msra.mxu0 %v247
    %632 = vmatpush.msra.mxu0 %v244
    %633 = vmatpush.msra.mxu0 %v241
    %634 = vmatpush.msra.mxu0 %v238
    %635 = vmatpush.msra.mxu0 %v235
    %636 = vmatpush.msra.mxu0 %v232
    %637 = vmatmul.f32.gmra.mxu0 %v130
    %v638 = vpop.f32.mrf.mxu0
    %v639 = vadd.f32 %v619, %v638
    %640 = vdwg.mxu0
    %641 = vmatpush.msra.mxu0 %v325
    %642 = vmatpush.msra.mxu0 %v322
    %643 = vmatpush.msra.mxu0 %v319
    %644 = vmatpush.msra.mxu0 %v316
    %645 = vmatpush.msra.mxu0 %v313
    %646 = vmatpush.msra.mxu0 %v310
    %647 = vmatpush.msra.mxu0 %v307
    %648 = vmatpush.msra.mxu0 %v304
    %649 = vmatpush.msra.mxu0 %v301
    %650 = vmatpush.msra.mxu0 %v298
    %651 = vmatpush.msra.mxu0 %v295
    %652 = vmatpush.msra.mxu0 %v292
    %653 = vmatpush.msra.mxu0 %v289
    %654 = vmatpush.msra.mxu0 %v286
    %655 = vmatpush.msra.mxu0 %v283
    %656 = vmatpush.msra.mxu0 %v280
    %657 = vmatmul.f32.gmra.mxu0 %v131
    %v658 = vpop.f32.mrf.mxu0
    %v659 = vadd.f32 %v639, %v658
    %660 = vdwg.mxu0
    %661 = vmatpush.msra.mxu0 %v373
    %662 = vmatpush.msra.mxu0 %v370
    %663 = vmatpush.msra.mxu0 %v367
    %664 = vmatpush.msra.mxu0 %v364
    %665 = vmatpush.msra.mxu0 %v361
    %666 = vmatpush.msra.mxu0 %v358
    %667 = vmatpush.msra.mxu0 %v355
    %668 = vmatpush.msra.mxu0 %v352
    %669 = vmatpush.msra.mxu0 %v349
    %670 = vmatpush.msra.mxu0 %v346
    %671 = vmatpush.msra.mxu0 %v343
    %672 = vmatpush.msra.mxu0 %v340
    %673 = vmatpush.msra.mxu0 %v337
    %674 = vmatpush.msra.mxu0 %v334
    %675 = vmatpush.msra.mxu0 %v331
    %676 = vmatpush.msra.mxu0 %v328
    %677 = vmatmul.f32.gmra.mxu0 %v132
    %v678 = vpop.f32.mrf.mxu0
    %v679 = vadd.f32 %v659, %v678
    %680 = vdwg.mxu0
    %681 = vmatpush.msra.mxu0 %v421
    %682 = vmatpush.msra.mxu0 %v418
    %683 = vmatpush.msra.mxu0 %v415
    %684 = vmatpush.msra.mxu0 %v412
    %685 = vmatpush.msra.mxu0 %v409
    %686 = vmatpush.msra.mxu0 %v406
    %687 = vmatpush.msra.mxu0 %v403
    %688 = vmatpush.msra.mxu0 %v400
    %689 = vmatpush.msra.mxu0 %v397
    %690 = vmatpush.msra.mxu0 %v394
    %691 = vmatpush.msra.mxu0 %v391
    %692 = vmatpush.msra.mxu0 %v388
    %693 = vmatpush.msra.mxu0 %v385
    %694 = vmatpush.msra.mxu0 %v382
    %695 = vmatpush.msra.mxu0 %v379
    %696 = vmatpush.msra.mxu0 %v376
    %697 = vmatmul.f32.gmra.mxu0 %v133
    %v698 = vpop.f32.mrf.mxu0
    %v699 = vadd.f32 %v679, %v698
    %700 = vdwg.mxu0
    %701 = vmatpush.msra.mxu0 0.0
    %702 = vmatpush.msra.mxu0 0.0
    %703 = vmatpush.msra.mxu0 0.0
    %704 = vmatpush.msra.mxu0 0.0
    %705 = vmatpush.msra.mxu0 0.0
    %706 = vmatpush.msra.mxu0 0.0
    %707 = vmatpush.msra.mxu0 0.0
    %708 = vmatpush.msra.mxu0 0.0
    %709 = vmatpush.msra.mxu0 0.0
    %710 = vmatpush.msra.mxu0 0.0
    %711 = vmatpush.msra.mxu0 0.0
    %712 = vmatpush.msra.mxu0 0.0
    %713 = vmatpush.msra.mxu0 0.0
    %714 = vmatpush.msra.mxu0 0.0
    %715 = vmatpush.msra.mxu0 %v427
    %716 = vmatpush.msra.mxu0 %v424
    %717 = vmatmul.f32.gmra.mxu0 %v439
    %v718 = vpop.f32.mrf.mxu0
    %v719 = vadd.f32 %v699, %v718
    %720 = vdwg.mxu0
    %721 = vmatpush.msra.mxu0 %v182
    %722 = vmatpush.msra.mxu0 %v179
    %723 = vmatpush.msra.mxu0 %v176
    %724 = vmatpush.msra.mxu0 %v173
    %725 = vmatpush.msra.mxu0 %v170
    %726 = vmatpush.msra.mxu0 %v167
    %727 = vmatpush.msra.mxu0 %v164
    %728 = vmatpush.msra.mxu0 %v161
    %729 = vmatpush.msra.mxu0 %v158
    %730 = vmatpush.msra.mxu0 %v155
    %731 = vmatpush.msra.mxu0 %v152
    %732 = vmatpush.msra.mxu0 %v149
    %733 = vmatpush.msra.mxu0 %v146
    %734 = vmatpush.msra.mxu0 %v143
    %735 = vmatpush.msra.mxu0 %v140
    %736 = vmatpush.msra.mxu0 %v137
    %737 = vmatmul.f32.gmra.mxu0 %v128
    %v738 = vpop.f32.mrf.mxu0
    %v739 = vadd.f32 %v433, %v738
    %740 = vdwg.mxu0
    %741 = vmatpush.msra.mxu0 %v230
    %742 = vmatpush.msra.mxu0 %v227
    %743 = vmatpush.msra.mxu0 %v224
    %744 = vmatpush.msra.mxu0 %v221
    %745 = vmatpush.msra.mxu0 %v218
    %746 = vmatpush.msra.mxu0 %v215
    %747 = vmatpush.msra.mxu0 %v212
    %748 = vmatpush.msra.mxu0 %v209
    %749 = vmatpush.msra.mxu0 %v206
    %750 = vmatpush.msra.mxu0 %v203
    %751 = vmatpush.msra.mxu0 %v200
    %752 = vmatpush.msra.mxu0 %v197
    %753 = vmatpush.msra.mxu0 %v194
    %754 = vmatpush.msra.mxu0 %v191
    %755 = vmatpush.msra.mxu0 %v188
    %756 = vmatpush.msra.mxu0 %v185
    %757 = vmatmul.f32.gmra.mxu0 %v129
    %v758 = vpop.f32.mrf.mxu0
    %v759 = vadd.f32 %v739, %v758
    %760 = vdwg.mxu0
    %761 = vmatpush.msra.mxu0 %v278
    %762 = vmatpush.msra.mxu0 %v275
    %763 = vmatpush.msra.mxu0 %v272
    %764 = vmatpush.msra.mxu0 %v269
    %765 = vmatpush.msra.mxu0 %v266
    %766 = vmatpush.msra.mxu0 %v263
    %767 = vmatpush.msra.mxu0 %v260
    %768 = vmatpush.msra.mxu0 %v257
    %769 = vmatpush.msra.mxu0 %v254
    %770 = vmatpush.msra.mxu0 %v251
    %771 = vmatpush.msra.mxu0 %v248
    %772 = vmatpush.msra.mxu0 %v245
    %773 = vmatpush.msra.mxu0 %v242
    %774 = vmatpush.msra.mxu0 %v239
    %775 = vmatpush.msra.mxu0 %v236
    %776 = vmatpush.msra.mxu0 %v233
    %777 = vmatmul.f32.gmra.mxu0 %v130
    %v778 = vpop.f32.mrf.mxu0
    %v779 = vadd.f32 %v759, %v778
    %780 = vdwg.mxu0
    %781 = vmatpush.msra.mxu0 %v326
    %782 = vmatpush.msra.mxu0 %v323
    %783 = vmatpush.msra.mxu0 %v320
    %784 = vmatpush.msra.mxu0 %v317
    %785 = vmatpush.msra.mxu0 %v314
    %786 = vmatpush.msra.mxu0 %v311
    %787 = vmatpush.msra.mxu0 %v308
    %788 = vmatpush.msra.mxu0 %v305
    %789 = vmatpush.msra.mxu0 %v302
    %790 = vmatpush.msra.mxu0 %v299
    %791 = vmatpush.msra.mxu0 %v296
    %792 = vmatpush.msra.mxu0 %v293
    %793 = vmatpush.msra.mxu0 %v290
    %794 = vmatpush.msra.mxu0 %v287
    %795 = vmatpush.msra.mxu0 %v284
    %796 = vmatpush.msra.mxu0 %v281
    %797 = vmatmul.f32.gmra.mxu0 %v131
    %v798 = vpop.f32.mrf.mxu0
    %v799 = vadd.f32 %v779, %v798
    %800 = vdwg.mxu0
    %801 = vmatpush.msra.mxu0 %v374
    %802 = vmatpush.msra.mxu0 %v371
    %803 = vmatpush.msra.mxu0 %v368
    %804 = vmatpush.msra.mxu0 %v365
    %805 = vmatpush.msra.mxu0 %v362
    %806 = vmatpush.msra.mxu0 %v359
    %807 = vmatpush.msra.mxu0 %v356
    %808 = vmatpush.msra.mxu0 %v353
    %809 = vmatpush.msra.mxu0 %v350
    %810 = vmatpush.msra.mxu0 %v347
    %811 = vmatpush.msra.mxu0 %v344
    %812 = vmatpush.msra.mxu0 %v341
    %813 = vmatpush.msra.mxu0 %v338
    %814 = vmatpush.msra.mxu0 %v335
    %815 = vmatpush.msra.mxu0 %v332
    %816 = vmatpush.msra.mxu0 %v329
    %817 = vmatmul.f32.gmra.mxu0 %v132
    %v818 = vpop.f32.mrf.mxu0
    %v819 = vadd.f32 %v799, %v818
    %820 = vdwg.mxu0
    %821 = vmatpush.msra.mxu0 %v422
    %822 = vmatpush.msra.mxu0 %v419
    %823 = vmatpush.msra.mxu0 %v416
    %824 = vmatpush.msra.mxu0 %v413
    %825 = vmatpush.msra.mxu0 %v410
    %826 = vmatpush.msra.mxu0 %v407
    %827 = vmatpush.msra.mxu0 %v404
    %828 = vmatpush.msra.mxu0 %v401
    %829 = vmatpush.msra.mxu0 %v398
    %830 = vmatpush.msra.mxu0 %v395
    %831 = vmatpush.msra.mxu0 %v392
    %832 = vmatpush.msra.mxu0 %v389
    %833 = vmatpush.msra.mxu0 %v386
    %834 = vmatpush.msra.mxu0 %v383
    %835 = vmatpush.msra.mxu0 %v380
    %836 = vmatpush.msra.mxu0 %v377
    %837 = vmatmul.f32.gmra.mxu0 %v133
    %v838 = vpop.f32.mrf.mxu0
    %v839 = vadd.f32 %v819, %v838
    %840 = vdwg.mxu0
    %841 = vmatpush.msra.mxu0 0.0
    %842 = vmatpush.msra.mxu0 0.0
    %843 = vmatpush.msra.mxu0 0.0
    %844 = vmatpush.msra.mxu0 0.0
    %845 = vmatpush.msra.mxu0 0.0
    %846 = vmatpush.msra.mxu0 0.0
    %847 = vmatpush.msra.mxu0 0.0
    %848 = vmatpush.msra.mxu0 0.0
    %849 = vmatpush.msra.mxu0 0.0
    %850 = vmatpush.msra.mxu0 0.0
    %851 = vmatpush.msra.mxu0 0.0
    %852 = vmatpush.msra.mxu0 0.0
    %853 = vmatpush.msra.mxu0 0.0
    %854 = vmatpush.msra.mxu0 0.0
    %855 = vmatpush.msra.mxu0 %v428
    %856 = vmatpush.msra.mxu0 %v425
    %857 = vmatmul.f32.gmra.mxu0 %v439
    %v858 = vpop.f32.mrf.mxu0
    %v859 = vadd.f32 %v839, %v858
    %860 = vdwg.mxu0
    %v861 = vmax.f32 %v579, 0.0
    %v862 = vmax.f32 %v719, 0.0
    %v863 = vmax.f32 %v859, 0.0
    %v864 = vld [vmem:[#allocation8] sm:$0xff]
    %v865 = vld [vmem:[#allocation8 + $0x8] sm:$0xff]
    %v866 = vld [vmem:[#allocation8 + $0x10] sm:$0xff]
    %v867 = vld [vmem:[#allocation8 + $0x18] sm:$0xff]
    %v868 = vld [vmem:[#allocation8 + $0x20] sm:$0xff]
    %v869 = vld [vmem:[#allocation8 + $0x28] sm:$0xff]
    %v870 = vld [vmem:[#allocation8 + $0x30] sm:$0xff]
    %v871 = vld [vmem:[#allocation8 + $0x38] sm:$0xff]
    %v872 = vld [vmem:[#allocation8 + $0x40] sm:$0xff]
    %v873 = vld [vmem:[#allocation8 + $0x48] sm:$0xff]
    %v874 = vld [vmem:[#allocation8 + $0x50] sm:$0xff]
    %v875 = vld [vmem:[#allocation8 + $0x58] sm:$0xff]
    %v876 = vld [vmem:[#allocation8 + $0x60] sm:$0xff]
    %v877 = vld [vmem:[#allocation8 + $0x68] sm:$0xff]
    %v878 = vld [vmem:[#allocation8 + $0x70] sm:$0xff]
    %v879 = vld [vmem:[#allocation8 + $0x78] sm:$0xff]
    %v880 = vld [vmem:[#allocation8 + $0x80] sm:$0xff]
    %v881 = vld [vmem:[#allocation8 + $0x88] sm:$0xff]
    %v882 = vld [vmem:[#allocation8 + $0x90] sm:$0xff]
    %v883 = vld [vmem:[#allocation8 + $0x98] sm:$0xff]
    %v884 = vld [vmem:[#allocation8 + $0xa0] sm:$0xff]
    %v885 = vld [vmem:[#allocation8 + $0xa8] sm:$0xff]
    %v886 = vld [vmem:[#allocation8 + $0xb0] sm:$0xff]
    %v887 = vld [vmem:[#allocation8 + $0xb8] sm:$0xff]
    %v888 = vld [vmem:[#allocation8 + $0xc0] sm:$0xff]
    %v889 = vld [vmem:[#allocation8 + $0xc8] sm:$0xff]
    %v890 = vld [vmem:[#allocation8 + $0xd0] sm:$0xff]
    %v891 = vld [vmem:[#allocation8 + $0xd8] sm:$0xff]
    %v892 = vld [vmem:[#allocation8 + $0xe0] sm:$0xff]
    %v893 = vld [vmem:[#allocation8 + $0xe8] sm:$0xff]
    %v894 = vld [vmem:[#allocation8 + $0xf0] sm:$0xff]
    %v895 = vld [vmem:[#allocation8 + $0xf8] sm:$0xff]
    %v896 = vld [vmem:[#allocation8 + $0x100] sm:$0xff]
    %v897 = vld [vmem:[#allocation8 + $0x108] sm:$0xff]
    %v898 = vld [vmem:[#allocation8 + $0x110] sm:$0xff]
    %v899 = vld [vmem:[#allocation8 + $0x118] sm:$0xff]
    %v900 = vld [vmem:[#allocation8 + $0x120] sm:$0xff]
    %v901 = vld [vmem:[#allocation8 + $0x128] sm:$0xff]
    %v902 = vld [vmem:[#allocation8 + $0x130] sm:$0xff]
    %v903 = vld [vmem:[#allocation8 + $0x138] sm:$0xff]
    %v904 = vld [vmem:[#allocation8 + $0x140] sm:$0xff]
    %v905 = vld [vmem:[#allocation8 + $0x148] sm:$0xff]
    %v906 = vld [vmem:[#allocation8 + $0x150] sm:$0xff]
    %v907 = vld [vmem:[#allocation8 + $0x158] sm:$0xff]
    %v908 = vld [vmem:[#allocation8 + $0x160] sm:$0xff]
    %v909 = vld [vmem:[#allocation8 + $0x168] sm:$0xff]
    %v910 = vld [vmem:[#allocation8 + $0x170] sm:$0xff]
    %v911 = vld [vmem:[#allocation8 + $0x178] sm:$0xff]
    %v912 = vld [vmem:[#allocation8 + $0x180] sm:$0xff]
    %v913 = vld [vmem:[#allocation8 + $0x188] sm:$0xff]
    %v914 = vld [vmem:[#allocation8 + $0x190] sm:$0xff]
    %v915 = vld [vmem:[#allocation8 + $0x198] sm:$0xff]
    %v916 = vld [vmem:[#allocation8 + $0x1a0] sm:$0xff]
    %v917 = vld [vmem:[#allocation8 + $0x1a8] sm:$0xff]
    %v918 = vld [vmem:[#allocation8 + $0x1b0] sm:$0xff]
    %v919 = vld [vmem:[#allocation8 + $0x1b8] sm:$0xff]
    %v920 = vld [vmem:[#allocation8 + $0x1c0] sm:$0xff]
    %v921 = vld [vmem:[#allocation8 + $0x1c8] sm:$0xff]
    %v922 = vld [vmem:[#allocation8 + $0x1d0] sm:$0xff]
    %v923 = vld [vmem:[#allocation8 + $0x1d8] sm:$0xff]
    %v924 = vld [vmem:[#allocation8 + $0x1e0] sm:$0xff]
    %v925 = vld [vmem:[#allocation8 + $0x1e8] sm:$0xff]
    %v926 = vld [vmem:[#allocation8 + $0x1f0] sm:$0xff]
    %v927 = vld [vmem:[#allocation8 + $0x1f8] sm:$0xff]
    %v928 = vld [vmem:[#allocation8 + $0x200] sm:$0xff]
    %v929 = vld [vmem:[#allocation8 + $0x208] sm:$0xff]
    %v930 = vld [vmem:[#allocation8 + $0x210] sm:$0xff]
    %v931 = vld [vmem:[#allocation8 + $0x218] sm:$0xff]
    %v932 = vld [vmem:[#allocation8 + $0x220] sm:$0xff]
    %v933 = vld [vmem:[#allocation8 + $0x228] sm:$0xff]
    %v934 = vld [vmem:[#allocation8 + $0x230] sm:$0xff]
    %v935 = vld [vmem:[#allocation8 + $0x238] sm:$0xff]
    %v936 = vld [vmem:[#allocation8 + $0x240] sm:$0xff]
    %v937 = vld [vmem:[#allocation8 + $0x248] sm:$0xff]
    %v938 = vld [vmem:[#allocation8 + $0x250] sm:$0xff]
    %v939 = vld [vmem:[#allocation8 + $0x258] sm:$0xff]
    %v940 = vld [vmem:[#allocation8 + $0x260] sm:$0xff]
    %v941 = vld [vmem:[#allocation8 + $0x268] sm:$0xff]
    %v942 = vld [vmem:[#allocation8 + $0x270] sm:$0xff]
    %v943 = vld [vmem:[#allocation8 + $0x278] sm:$0xff]
    %v944 = vld [vmem:[#allocation8 + $0x280] sm:$0xff]
    %v945 = vld [vmem:[#allocation8 + $0x288] sm:$0xff]
    %v946 = vld [vmem:[#allocation8 + $0x290] sm:$0xff]
    %v947 = vld [vmem:[#allocation8 + $0x298] sm:$0xff]
    %v948 = vld [vmem:[#allocation8 + $0x2a0] sm:$0xff]
    %v949 = vld [vmem:[#allocation8 + $0x2a8] sm:$0xff]
    %v950 = vld [vmem:[#allocation8 + $0x2b0] sm:$0xff]
    %v951 = vld [vmem:[#allocation8 + $0x2b8] sm:$0xff]
    %v952 = vld [vmem:[#allocation8 + $0x2c0] sm:$0xff]
    %v953 = vld [vmem:[#allocation8 + $0x2c8] sm:$0xff]
    %v954 = vld [vmem:[#allocation8 + $0x2d0] sm:$0xff]
    %v955 = vld [vmem:[#allocation8 + $0x2d8] sm:$0xff]
    %v956 = vld [vmem:[#allocation8 + $0x2e0] sm:$0xff]
    %v957 = vld [vmem:[#allocation8 + $0x2e8] sm:$0xff]
    %v958 = vld [vmem:[#allocation8 + $0x2f0] sm:$0xff]
    %v959 = vld [vmem:[#allocation8 + $0x2f8] sm:$0xff]
    %v960 = vld [vmem:[#allocation10] sm:$0x3]
    %v962 = vperm.slane %v960, 0
    %v963 = vperm.slane %v960, 1
    %966 = vmatpush.msra.mxu0 %v894
    %967 = vmatpush.msra.mxu0 %v892
    %968 = vmatpush.msra.mxu0 %v890
    %969 = vmatpush.msra.mxu0 %v888
    %970 = vmatpush.msra.mxu0 %v886
    %971 = vmatpush.msra.mxu0 %v884
    %972 = vmatpush.msra.mxu0 %v882
    %973 = vmatpush.msra.mxu0 %v880
    %974 = vmatpush.msra.mxu0 %v878
    %975 = vmatpush.msra.mxu0 %v876
    %976 = vmatpush.msra.mxu0 %v874
    %977 = vmatpush.msra.mxu0 %v872
    %978 = vmatpush.msra.mxu0 %v870
    %979 = vmatpush.msra.mxu0 %v868
    %980 = vmatpush.msra.mxu0 %v866
    %981 = vmatpush.msra.mxu0 %v864
    %982 = vmatmul.f32.gmra.mxu0 %v861
    %v983 = vpop.f32.mrf.mxu0
    %v984 = vadd.f32 %v962, %v983
    %985 = vdwg.mxu0
    %986 = vmatpush.msra.mxu0 %v926
    %987 = vmatpush.msra.mxu0 %v924
    %988 = vmatpush.msra.mxu0 %v922
    %989 = vmatpush.msra.mxu0 %v920
    %990 = vmatpush.msra.mxu0 %v918
    %991 = vmatpush.msra.mxu0 %v916
    %992 = vmatpush.msra.mxu0 %v914
    %993 = vmatpush.msra.mxu0 %v912
    %994 = vmatpush.msra.mxu0 %v910
    %995 = vmatpush.msra.mxu0 %v908
    %996 = vmatpush.msra.mxu0 %v906
    %997 = vmatpush.msra.mxu0 %v904
    %998 = vmatpush.msra.mxu0 %v902
    %999 = vmatpush.msra.mxu0 %v900
    %1000 = vmatpush.msra.mxu0 %v898
    %1001 = vmatpush.msra.mxu0 %v896
    %1002 = vmatmul.f32.gmra.mxu0 %v862
    %v1003 = vpop.f32.mrf.mxu0
    %v1004 = vadd.f32 %v984, %v1003
    %1005 = vdwg.mxu0
    %1006 = vmatpush.msra.mxu0 %v958
    %1007 = vmatpush.msra.mxu0 %v956
    %1008 = vmatpush.msra.mxu0 %v954
    %1009 = vmatpush.msra.mxu0 %v952
    %1010 = vmatpush.msra.mxu0 %v950
    %1011 = vmatpush.msra.mxu0 %v948
    %1012 = vmatpush.msra.mxu0 %v946
    %1013 = vmatpush.msra.mxu0 %v944
    %1014 = vmatpush.msra.mxu0 %v942
    %1015 = vmatpush.msra.mxu0 %v940
    %1016 = vmatpush.msra.mxu0 %v938
    %1017 = vmatpush.msra.mxu0 %v936
    %1018 = vmatpush.msra.mxu0 %v934
    %1019 = vmatpush.msra.mxu0 %v932
    %1020 = vmatpush.msra.mxu0 %v930
    %1021 = vmatpush.msra.mxu0 %v928
    %1022 = vmatmul.f32.gmra.mxu0 %v863
    %v1023 = vpop.f32.mrf.mxu0
    %v1024 = vadd.f32 %v1004, %v1023
    %1025 = vdwg.mxu0
    %1026 = vmatpush.msra.mxu0 %v895
    %1027 = vmatpush.msra.mxu0 %v893
    %1028 = vmatpush.msra.mxu0 %v891
    %1029 = vmatpush.msra.mxu0 %v889
    %1030 = vmatpush.msra.mxu0 %v887
    %1031 = vmatpush.msra.mxu0 %v885
    %1032 = vmatpush.msra.mxu0 %v883
    %1033 = vmatpush.msra.mxu0 %v881
    %1034 = vmatpush.msra.mxu0 %v879
    %1035 = vmatpush.msra.mxu0 %v877
    %1036 = vmatpush.msra.mxu0 %v875
    %1037 = vmatpush.msra.mxu0 %v873
    %1038 = vmatpush.msra.mxu0 %v871
    %1039 = vmatpush.msra.mxu0 %v869
    %1040 = vmatpush.msra.mxu0 %v867
    %1041 = vmatpush.msra.mxu0 %v865
    %1042 = vmatmul.f32.gmra.mxu0 %v861
    %v1043 = vpop.f32.mrf.mxu0
    %v1044 = vadd.f32 %v963, %v1043
    %1045 = vdwg.mxu0
    %1046 = vmatpush.msra.mxu0 %v927
    %1047 = vmatpush.msra.mxu0 %v925
    %1048 = vmatpush.msra.mxu0 %v923
    %1049 = vmatpush.msra.mxu0 %v921
    %1050 = vmatpush.msra.mxu0 %v919
    %1051 = vmatpush.msra.mxu0 %v917
    %1052 = vmatpush.msra.mxu0 %v915
    %1053 = vmatpush.msra.mxu0 %v913
    %1054 = vmatpush.msra.mxu0 %v911
    %1055 = vmatpush.msra.mxu0 %v909
    %1056 = vmatpush.msra.mxu0 %v907
    %1057 = vmatpush.msra.mxu0 %v905
    %1058 = vmatpush.msra.mxu0 %v903
    %1059 = vmatpush.msra.mxu0 %v901
    %1060 = vmatpush.msra.mxu0 %v899
    %1061 = vmatpush.msra.mxu0 %v897
    %1062 = vmatmul.f32.gmra.mxu0 %v862
    %v1063 = vpop.f32.mrf.mxu0
    %v1064 = vadd.f32 %v1044, %v1063
    %1065 = vdwg.mxu0
    %1066 = vmatpush.msra.mxu0 %v959
    %1067 = vmatpush.msra.mxu0 %v957
    %1068 = vmatpush.msra.mxu0 %v955
    %1069 = vmatpush.msra.mxu0 %v953
    %1070 = vmatpush.msra.mxu0 %v951
    %1071 = vmatpush.msra.mxu0 %v949
    %1072 = vmatpush.msra.mxu0 %v947
    %1073 = vmatpush.msra.mxu0 %v945
    %1074 = vmatpush.msra.mxu0 %v943
    %1075 = vmatpush.msra.mxu0 %v941
    %1076 = vmatpush.msra.mxu0 %v939
    %1077 = vmatpush.msra.mxu0 %v937
    %1078 = vmatpush.msra.mxu0 %v935
    %1079 = vmatpush.msra.mxu0 %v933
    %1080 = vmatpush.msra.mxu0 %v931
    %1081 = vmatpush.msra.mxu0 %v929
    %1082 = vmatmul.f32.gmra.mxu0 %v863
    %v1083 = vpop.f32.mrf.mxu0
    %v1084 = vadd.f32 %v1064, %v1083
    %1085 = vdwg.mxu0
    %v1086 = vmax.f32 %v1024, 0.0
    %v1087 = vmax.f32 %v1084, 0.0
    %v1088 = vld [vmem:[#allocation11] sm:$0xff]
    %v1089 = vld [vmem:[#allocation11 + $0x8] sm:$0xff]
    %v1090 = vld [vmem:[#allocation11 + $0x10] sm:$0xff]
    %v1091 = vld [vmem:[#allocation11 + $0x18] sm:$0xff]
    %v1092 = vld [vmem:[#allocation11 + $0x20] sm:$0xff]
    %v1093 = vld [vmem:[#allocation11 + $0x28] sm:$0xff]
    %v1094 = vld [vmem:[#allocation11 + $0x30] sm:$0xff]
    %v1095 = vld [vmem:[#allocation11 + $0x38] sm:$0xff]
    %v1096 = vld [vmem:[#allocation11 + $0x40] sm:$0xff]
    %v1097 = vld [vmem:[#allocation11 + $0x48] sm:$0xff]
    %v1098 = vld [vmem:[#allocation11 + $0x50] sm:$0xff]
    %v1099 = vld [vmem:[#allocation11 + $0x58] sm:$0xff]
    %v1100 = vld [vmem:[#allocation11 + $0x60] sm:$0xff]
    %v1101 = vld [vmem:[#allocation11 + $0x68] sm:$0xff]
    %v1102 = vld [vmem:[#allocation11 + $0x70] sm:$0xff]
    %v1103 = vld [vmem:[#allocation11 + $0x78] sm:$0xff]
    %v1104 = vld [vmem:[#allocation11 + $0x80] sm:$0xff]
    %v1105 = vld [vmem:[#allocation11 + $0x88] sm:$0xff]
    %v1106 = vld [vmem:[#allocation11 + $0x90] sm:$0xff]
    %v1107 = vld [vmem:[#allocation11 + $0x98] sm:$0xff]
    %v1108 = vld [vmem:[#allocation11 + $0xa0] sm:$0xff]
    %v1109 = vld [vmem:[#allocation11 + $0xa8] sm:$0xff]
    %v1110 = vld [vmem:[#allocation11 + $0xb0] sm:$0xff]
    %v1111 = vld [vmem:[#allocation11 + $0xb8] sm:$0xff]
    %v1112 = vld [vmem:[#allocation11 + $0xc0] sm:$0xff]
    %v1113 = vld [vmem:[#allocation11 + $0xc8] sm:$0xff]
    %v1114 = vld [vmem:[#allocation11 + $0xd0] sm:$0xff]
    %v1115 = vld [vmem:[#allocation11 + $0xd8] sm:$0xff]
    %v1116 = vld [vmem:[#allocation11 + $0xe0] sm:$0xff]
    %v1117 = vld [vmem:[#allocation11 + $0xe8] sm:$0xff]
    %v1118 = vld [vmem:[#allocation11 + $0xf0] sm:$0xff]
    %v1119 = vld [vmem:[#allocation11 + $0xf8] sm:$0xff]
    %v1120 = vld [vmem:[#allocation13] sm:$0x1]
    %v1122 = vperm.slane %v1120, 0
    %1124 = vmatpush.msra.mxu0 %v1103
    %1125 = vmatpush.msra.mxu0 %v1102
    %1126 = vmatpush.msra.mxu0 %v1101
    %1127 = vmatpush.msra.mxu0 %v1100
    %1128 = vmatpush.msra.mxu0 %v1099
    %1129 = vmatpush.msra.mxu0 %v1098
    %1130 = vmatpush.msra.mxu0 %v1097
    %1131 = vmatpush.msra.mxu0 %v1096
    %1132 = vmatpush.msra.mxu0 %v1095
    %1133 = vmatpush.msra.mxu0 %v1094
    %1134 = vmatpush.msra.mxu0 %v1093
    %1135 = vmatpush.msra.mxu0 %v1092
    %1136 = vmatpush.msra.mxu0 %v1091
    %1137 = vmatpush.msra.mxu0 %v1090
    %1138 = vmatpush.msra.mxu0 %v1089
    %1139 = vmatpush.msra.mxu0 %v1088
    %1140 = vmatmul.f32.gmra.mxu0 %v1086
    %v1141 = vpop.f32.mrf.mxu0
    %v1142 = vadd.f32 %v1122, %v1141
    %1143 = vdwg.mxu0
    %1144 = vmatpush.msra.mxu0 %v1119
    %1145 = vmatpush.msra.mxu0 %v1118
    %1146 = vmatpush.msra.mxu0 %v1117
    %1147 = vmatpush.msra.mxu0 %v1116
    %1148 = vmatpush.msra.mxu0 %v1115
    %1149 = vmatpush.msra.mxu0 %v1114
    %1150 = vmatpush.msra.mxu0 %v1113
    %1151 = vmatpush.msra.mxu0 %v1112
    %1152 = vmatpush.msra.mxu0 %v1111
    %1153 = vmatpush.msra.mxu0 %v1110
    %1154 = vmatpush.msra.mxu0 %v1109
    %1155 = vmatpush.msra.mxu0 %v1108
    %1156 = vmatpush.msra.mxu0 %v1107
    %1157 = vmatpush.msra.mxu0 %v1106
    %1158 = vmatpush.msra.mxu0 %v1105
    %1159 = vmatpush.msra.mxu0 %v1104
    %1160 = vmatmul.f32.gmra.mxu0 %v1087
    %v1161 = vpop.f32.mrf.mxu0
    %v1162 = vadd.f32 %v1142, %v1161
    %1163 = vdwg.mxu0
    %1164 = vst [vmem:[#allocation14] sm:$0xff] %v1162
    // Predicated region
    $region58: #{tpu_custom_call.1} parent=1 // pred_check
      _
    $region59: #{tpu_custom_call.1} parent=1 // pred_check_branch
      %1166 = sbr.rel (0) target = $region61
    $region60: #{tpu_custom_call.1} parent=1 // pred_region
      %1168 = vsyncadd [#allocation4], 0
      %s1170 = sshll.u32 [#allocation14], 4
      %s1171 = int_to_ptr.vmem [resolvable:$true] %s1170
      %s1172 = sshll.u32 %s7, 4
      %s1173 = int_to_ptr.hbm [resolvable:$true] %s1172
      %1175 = dma.vmem_to_hbm [thread:$0]  %s1171, 128, %s1173, [#allocation4]
    $region61: #{tpu_custom_call.1} parent=1 // pred_fallthru
      _
    // Predicated region
    $region62: #{tpu_custom_call.1} parent=1 // pred_check
      _
    $region63: #{tpu_custom_call.1} parent=1 // pred_check_branch
      %1177 = sbr.rel (0) target = $region65
    $region64: #{tpu_custom_call.1} parent=1 // pred_region
      %1179 = dma.done [#allocation4], 128
    $region65: #{tpu_custom_call.1} parent=1 // pred_fallthru
      _
    %1180 = vsyncpa [#allocation3], 1
    %1181 = vsyncpa [#allocation6], 1
    %1182 = vsyncpa [#allocation9], 1
    %1183 = vsyncpa [#allocation12], 1
    %1184 = vsyncpa [#allocation4], 1

// kernel: tpu_custom_call.1
$region0: #{tpu_custom_call.1}
  #allocation0 [shape = 'u32[]', space=smem, size = 0x4, offset = 0x4, fixed_abs, tag = 'smem constant byte address 0x4 - core index']
  #allocation1 [shape = 'u32[72,128]{1,0:T(1,128)}', space=vmem, size = 0x9000, scoped, tag = 'internal scratch']
  %s0 = inlined_call_operand.hbm [shape: f32[8,784], index: 0, kind: input, shape index: {}]
  %s1 = inlined_call_operand.hbm [shape: f32[784,384], index: 1, kind: input, shape index: {}]
  %s2 = inlined_call_operand.hbm [shape: f32[1,384], index: 2, kind: input, shape index: {}]
  %s3 = inlined_call_operand.hbm [shape: f32[384,256], index: 3, kind: input, shape index: {}]
  %s4 = inlined_call_operand.hbm [shape: f32[1,256], index: 4, kind: input, shape index: {}]
  %s5 = inlined_call_operand.hbm [shape: f32[256,128], index: 5, kind: input, shape index: {}]
  %s6 = inlined_call_operand.hbm [shape: f32[1,128], index: 6, kind: input, shape index: {}]
  %s7 = inlined_call_operand.hbm [shape: f32[8,128], index: 7, kind: output, shape index: {}]
  %s8 = sld [smem:[#allocation0]]
  $region66: #{tpu_custom_call.1} parent=0
    _
  %s10 = ssub.s32 1, %s8
  %s11 = scalar_select 0, %s10, %s8
  $region1: #{tpu_custom_call.1} parent=0
    #allocation2 [shape = 'u8[28672]{0}', space=vmem, size = 0x7000, scoped, tag = 'input window, operand 0, single buffered']
    #allocation3 [shape = 's32[1]{0}', space=sflag, size = 0x4, scoped, tag = 'scoped memory for tpu_custom_call.1']
    #allocation4 [shape = 's32[1]{0}', space=sflag, size = 0x4, scoped, tag = 'scoped memory for tpu_custom_call.1']
    #allocation5 [shape = 'u8[1204224]{0}', space=vmem, size = 0x126000, scoped, tag = 'input window, operand 1, single buffered']
    #allocation6 [shape = 's32[1]{0}', space=sflag, size = 0x4, scoped, tag = 'scoped memory for tpu_custom_call.1']
    #allocation7 [shape = 'u8[1536]{0}', space=vmem, size = 0x800, scoped, tag = 'input window, operand 2, single buffered']
    #allocation8 [shape = 'u8[393216]{0}', space=vmem, size = 0x60000, scoped, tag = 'input window, operand 3, single buffered']
    #allocation9 [shape = 's32[1]{0}', space=sflag, size = 0x4, scoped, tag = 'scoped memory for tpu_custom_call.1']
    #allocation10 [shape = 'u8[1024]{0}', space=vmem, size = 0x400, scoped, tag = 'input window, operand 4, single buffered']
    #allocation11 [shape = 'u8[131072]{0}', space=vmem, size = 0x20000, scoped, tag = 'input window, operand 5, single buffered']
    #allocation12 [shape = 's32[1]{0}', space=sflag, size = 0x4, scoped, tag = 'scoped memory for tpu_custom_call.1']
    #allocation13 [shape = 'u8[512]{0}', space=vmem, size = 0x400, scoped, tag = 'input window, operand 6, single buffered']
    #allocation14 [shape = 'u8[4096]{0}', space=vmem, size = 0x1000, scoped, tag = 'output window, operand 0, single buffered']
    %12 = vsyncpa [#allocation3], 0
    %13 = vsyncpa [#allocation6], 0
    %14 = vsyncpa [#allocation9], 0
    %15 = vsyncpa [#allocation12], 0
    %16 = vsyncpa [#allocation4], 0
    // Predicated region
    $region2: #{tpu_custom_call.1} parent=1 // pred_check
      _
    $region3: #{tpu_custom_call.1} parent=1 // pred_check_branch
      %18 = sbr.rel (0) target = $region5
    $region4: #{tpu_custom_call.1} parent=1 // pred_region
      %20 = vsyncadd [#allocation3], 0
      %s22 = sshll.u32 %s0, 4
      %s23 = int_to_ptr.hbm [resolvable:$true] %s22
      %s24 = sshll.u32 [#allocation2], 4
      %s25 = int_to_ptr.vmem [resolvable:$true] %s24
      %27 = dma.hbm_to_vmem [thread:$0]  %s23, 896, %s25, [#allocation3]
    $region5: #{tpu_custom_call.1} parent=1 // pred_fallthru
      _
    // Predicated region
    $region6: #{tpu_custom_call.1} parent=1 // pred_check
      _
    $region7: #{tpu_custom_call.1} parent=1 // pred_check_branch
      %29 = sbr.rel (0) target = $region9
    $region8: #{tpu_custom_call.1} parent=1 // pred_region
      %31 = vsyncadd [#allocation6], 0
      %s32 = sshll.u32 %s1, 4
      %s33 = int_to_ptr.hbm [resolvable:$true] %s32
      %s34 = sshll.u32 [#allocation5], 4
      %s35 = int_to_ptr.vmem [resolvable:$true] %s34
      %40 = dma.hbm_to_vmem [thread:$0]  %s33, 37632, %s35, [#allocation6], 384, 384, 24
    $region9: #{tpu_custom_call.1} parent=1 // pred_fallthru
      _
    // Predicated region
    $region10: #{tpu_custom_call.1} parent=1 // pred_check
      _
    $region11: #{tpu_custom_call.1} parent=1 // pred_check_branch
      %42 = sbr.rel (0) target = $region13
    $region12: #{tpu_custom_call.1} parent=1 // pred_region
      %44 = vsyncadd [#allocation6], 0
      %s46 = sshll.u32 %s2, 4
      %s47 = int_to_ptr.hbm [resolvable:$true] %s46
      %s48 = sshll.u32 [#allocation7], 4
      %s49 = int_to_ptr.vmem [resolvable:$true] %s48
      %51 = dma.hbm_to_vmem [thread:$0]  %s47, 48, %s49, [#allocation6]
    $region13: #{tpu_custom_call.1} parent=1 // pred_fallthru
      _
    // Predicated region
    $region14: #{tpu_custom_call.1} parent=1 // pred_check
      _
    $region15: #{tpu_custom_call.1} parent=1 // pred_check_branch
      %53 = sbr.rel (0) target = $region17
    $region16: #{tpu_custom_call.1} parent=1 // pred_region
      %55 = vsyncadd [#allocation9], 0
      %s56 = sshll.u32 %s3, 4
      %s57 = int_to_ptr.hbm [resolvable:$true] %s56
      %s58 = sshll.u32 [#allocation8], 4
      %s59 = int_to_ptr.vmem [resolvable:$true] %s58
      %64 = dma.hbm_to_vmem [thread:$0]  %s57, 12288, %s59, [#allocation9], 256, 256, 16
    $region17: #{tpu_custom_call.1} parent=1 // pred_fallthru
      _
    // Predicated region
    $region18: #{tpu_custom_call.1} parent=1 // pred_check
      _
    $region19: #{tpu_custom_call.1} parent=1 // pred_check_branch
      %66 = sbr.rel (0) target = $region21
    $region20: #{tpu_custom_call.1} parent=1 // pred_region
      %68 = vsyncadd [#allocation9], 0
      %s70 = sshll.u32 %s4, 4
      %s71 = int_to_ptr.hbm [resolvable:$true] %s70
      %s72 = sshll.u32 [#allocation10], 4
      %s73 = int_to_ptr.vmem [resolvable:$true] %s72
      %75 = dma.hbm_to_vmem [thread:$0]  %s71, 32, %s73, [#allocation9]
    $region21: #{tpu_custom_call.1} parent=1 // pred_fallthru
      _
    // Predicated region
    $region22: #{tpu_custom_call.1} parent=1 // pred_check
      _
    $region23: #{tpu_custom_call.1} parent=1 // pred_check_branch
      %77 = sbr.rel (0) target = $region25
    $region24: #{tpu_custom_call.1} parent=1 // pred_region
      %79 = vsyncadd [#allocation12], 0
      %s80 = sshll.u32 %s5, 4
      %s81 = int_to_ptr.hbm [resolvable:$true] %s80
      %s82 = sshll.u32 [#allocation11], 4
      %s83 = int_to_ptr.vmem [resolvable:$true] %s82
      %88 = dma.hbm_to_vmem [thread:$0]  %s81, 4096, %s83, [#allocation12], 128, 128, 8
    $region25: #{tpu_custom_call.1} parent=1 // pred_fallthru
      _
    // Predicated region
    $region26: #{tpu_custom_call.1} parent=1 // pred_check
      _
    $region27: #{tpu_custom_call.1} parent=1 // pred_check_branch
      %90 = sbr.rel (0) target = $region29
    $region28: #{tpu_custom_call.1} parent=1 // pred_region
      %92 = vsyncadd [#allocation12], 0
      %s94 = sshll.u32 %s6, 4
      %s95 = int_to_ptr.hbm [resolvable:$true] %s94
      %s96 = sshll.u32 [#allocation13], 4
      %s97 = int_to_ptr.vmem [resolvable:$true] %s96
      %99 = dma.hbm_to_vmem [thread:$0]  %s95, 16, %s97, [#allocation12]
    $region29: #{tpu_custom_call.1} parent=1 // pred_fallthru
      _
    // Predicated region
    $region30: #{tpu_custom_call.1} parent=1 // pred_check
      _
    $region31: #{tpu_custom_call.1} parent=1 // pred_check_branch
      %101 = sbr.rel (0) target = $region33
    $region32: #{tpu_custom_call.1} parent=1 // pred_region
      %103 = dma.done [#allocation3], 896
    $region33: #{tpu_custom_call.1} parent=1 // pred_fallthru
      _
    // Predicated region
    $region34: #{tpu_custom_call.1} parent=1 // pred_check
      _
    $region35: #{tpu_custom_call.1} parent=1 // pred_check_branch
      %105 = sbr.rel (0) target = $region37
    $region36: #{tpu_custom_call.1} parent=1 // pred_region
      %107 = dma.done [#allocation6], 37632
    $region37: #{tpu_custom_call.1} parent=1 // pred_fallthru
      _
    // Predicated region
    $region38: #{tpu_custom_call.1} parent=1 // pred_check
      _
    $region39: #{tpu_custom_call.1} parent=1 // pred_check_branch
      %109 = sbr.rel (0) target = $region41
    $region40: #{tpu_custom_call.1} parent=1 // pred_region
      %111 = dma.done [#allocation6], 48
    $region41: #{tpu_custom_call.1} parent=1 // pred_fallthru
      _
    // Predicated region
    $region42: #{tpu_custom_call.1} parent=1 // pred_check
      _
    $region43: #{tpu_custom_call.1} parent=1 // pred_check_branch
      %113 = sbr.rel (0) target = $region45
    $region44: #{tpu_custom_call.1} parent=1 // pred_region
      %115 = dma.done [#allocation9], 12288
    $region45: #{tpu_custom_call.1} parent=1 // pred_fallthru
      _
    // Predicated region
    $region46: #{tpu_custom_call.1} parent=1 // pred_check
      _
    $region47: #{tpu_custom_call.1} parent=1 // pred_check_branch
      %117 = sbr.rel (0) target = $region49
    $region48: #{tpu_custom_call.1} parent=1 // pred_region
      %119 = dma.done [#allocation9], 32
    $region49: #{tpu_custom_call.1} parent=1 // pred_fallthru
      _
    // Predicated region
    $region50: #{tpu_custom_call.1} parent=1 // pred_check
      _
    $region51: #{tpu_custom_call.1} parent=1 // pred_check_branch
      %121 = sbr.rel (0) target = $region53
    $region52: #{tpu_custom_call.1} parent=1 // pred_region
      %123 = dma.done [#allocation12], 4096
    $region53: #{tpu_custom_call.1} parent=1 // pred_fallthru
      _
    // Predicated region
    $region54: #{tpu_custom_call.1} parent=1 // pred_check
      _
    $region55: #{tpu_custom_call.1} parent=1 // pred_check_branch
      %125 = sbr.rel (0) target = $region57
    $region56: #{tpu_custom_call.1} parent=1 // pred_region
      %127 = dma.done [#allocation12], 16
    $region57: #{tpu_custom_call.1} parent=1 // pred_fallthru
      _
    %v128 = vld [vmem:[#allocation2] sm:$0xff]
    %v129 = vld [vmem:[#allocation2 + $0x8] sm:$0xff]
    %v130 = vld [vmem:[#allocation2 + $0x10] sm:$0xff]
    %v131 = vld [vmem:[#allocation2 + $0x18] sm:$0xff]
    %v132 = vld [vmem:[#allocation2 + $0x20] sm:$0xff]
    %v133 = vld [vmem:[#allocation2 + $0x28] sm:$0xff]
    %v134 = vld [vmem:[#allocation2 + $0x30] sm:$0xff]
    %v135 = vld [vmem:[#allocation5] sm:$0xff]
    %v136 = vld [vmem:[#allocation5 + $0x8] sm:$0xff]
    %v137 = vld [vmem:[#allocation5 + $0x10] sm:$0xff]
    %v138 = vld [vmem:[#allocation5 + $0x18] sm:$0xff]
    %v139 = vld [vmem:[#allocation5 + $0x20] sm:$0xff]
    %v140 = vld [vmem:[#allocation5 + $0x28] sm:$0xff]
    %v141 = vld [vmem:[#allocation5 + $0x30] sm:$0xff]
    %v142 = vld [vmem:[#allocation5 + $0x38] sm:$0xff]
    %v143 = vld [vmem:[#allocation5 + $0x40] sm:$0xff]
    %v144 = vld [vmem:[#allocation5 + $0x48] sm:$0xff]
    %v145 = vld [vmem:[#allocation5 + $0x50] sm:$0xff]
    %v146 = vld [vmem:[#allocation5 + $0x58] sm:$0xff]
    %v147 = vld [vmem:[#allocation5 + $0x60] sm:$0xff]
    %v148 = vld [vmem:[#allocation5 + $0x68] sm:$0xff]
    %v149 = vld [vmem:[#allocation5 + $0x70] sm:$0xff]
    %v150 = vld [vmem:[#allocation5 + $0x78] sm:$0xff]
    %v151 = vld [vmem:[#allocation5 + $0x80] sm:$0xff]
    %v152 = vld [vmem:[#allocation5 + $0x88] sm:$0xff]
    %v153 = vld [vmem:[#allocation5 + $0x90] sm:$0xff]
    %v154 = vld [vmem:[#allocation5 + $0x98] sm:$0xff]
    %v155 = vld [vmem:[#allocation5 + $0xa0] sm:$0xff]
    %v156 = vld [vmem:[#allocation5 + $0xa8] sm:$0xff]
    %v157 = vld [vmem:[#allocation5 + $0xb0] sm:$0xff]
    %v158 = vld [vmem:[#allocation5 + $0xb8] sm:$0xff]
    %v159 = vld [vmem:[#allocation5 + $0xc0] sm:$0xff]
    %v160 = vld [vmem:[#allocation5 + $0xc8] sm:$0xff]
    %v161 = vld [vmem:[#allocation5 + $0xd0] sm:$0xff]
    %v162 = vld [vmem:[#allocation5 + $0xd8] sm:$0xff]
    %v163 = vld [vmem:[#allocation5 + $0xe0] sm:$0xff]
    %v164 = vld [vmem:[#allocation5 + $0xe8] sm:$0xff]
    %v165 = vld [vmem:[#allocation5 + $0xf0] sm:$0xff]
    %v166 = vld [vmem:[#allocation5 + $0xf8] sm:$0xff]
    %v167 = vld [vmem:[#allocation5 + $0x100] sm:$0xff]
    %v168 = vld [vmem:[#allocation5 + $0x108] sm:$0xff]
    %v169 = vld [vmem:[#allocation5 + $0x110] sm:$0xff]
    %v170 = vld [vmem:[#allocation5 + $0x118] sm:$0xff]
    %v171 = vld [vmem:[#allocation5 + $0x120] sm:$0xff]
    %v172 = vld [vmem:[#allocation5 + $0x128] sm:$0xff]
    %v173 = vld [vmem:[#allocation5 + $0x130] sm:$0xff]
    %v174 = vld [vmem:[#allocation5 + $0x138] sm:$0xff]
    %v175 = vld [vmem:[#allocation5 + $0x140] sm:$0xff]
    %v176 = vld [vmem:[#allocation5 + $0x148] sm:$0xff]
    %v177 = vld [vmem:[#allocation5 + $0x150] sm:$0xff]
    %v178 = vld [vmem:[#allocation5 + $0x158] sm:$0xff]
    %v179 = vld [vmem:[#allocation5 + $0x160] sm:$0xff]
    %v180 = vld [vmem:[#allocation5 + $0x168] sm:$0xff]
    %v181 = vld [vmem:[#allocation5 + $0x170] sm:$0xff]
    %v182 = vld [vmem:[#allocation5 + $0x178] sm:$0xff]
    %v183 = vld [vmem:[#allocation5 + $0x180] sm:$0xff]
    %v184 = vld [vmem:[#allocation5 + $0x188] sm:$0xff]
    %v185 = vld [vmem:[#allocation5 + $0x190] sm:$0xff]
    %v186 = vld [vmem:[#allocation5 + $0x198] sm:$0xff]
    %v187 = vld [vmem:[#allocation5 + $0x1a0] sm:$0xff]
    %v188 = vld [vmem:[#allocation5 + $0x1a8] sm:$0xff]
    %v189 = vld [vmem:[#allocation5 + $0x1b0] sm:$0xff]
    %v190 = vld [vmem:[#allocation5 + $0x1b8] sm:$0xff]
    %v191 = vld [vmem:[#allocation5 + $0x1c0] sm:$0xff]
    %v192 = vld [vmem:[#allocation5 + $0x1c8] sm:$0xff]
    %v193 = vld [vmem:[#allocation5 + $0x1d0] sm:$0xff]
    %v194 = vld [vmem:[#allocation5 + $0x1d8] sm:$0xff]
    %v195 = vld [vmem:[#allocation5 + $0x1e0] sm:$0xff]
    %v196 = vld [vmem:[#allocation5 + $0x1e8] sm:$0xff]
    %v197 = vld [vmem:[#allocation5 + $0x1f0] sm:$0xff]
    %v198 = vld [vmem:[#allocation5 + $0x1f8] sm:$0xff]
    %v199 = vld [vmem:[#allocation5 + $0x200] sm:$0xff]
    %v200 = vld [vmem:[#allocation5 + $0x208] sm:$0xff]
    %v201 = vld [vmem:[#allocation5 + $0x210] sm:$0xff]
    %v202 = vld [vmem:[#allocation5 + $0x218] sm:$0xff]
    %v203 = vld [vmem:[#allocation5 + $0x220] sm:$0xff]
    %v204 = vld [vmem:[#allocation5 + $0x228] sm:$0xff]
    %v205 = vld [vmem:[#allocation5 + $0x230] sm:$0xff]
    %v206 = vld [vmem:[#allocation5 + $0x238] sm:$0xff]
    %v207 = vld [vmem:[#allocation5 + $0x240] sm:$0xff]
    %v208 = vld [vmem:[#allocation5 + $0x248] sm:$0xff]
    %v209 = vld [vmem:[#allocation5 + $0x250] sm:$0xff]
    %v210 = vld [vmem:[#allocation5 + $0x258] sm:$0xff]
    %v211 = vld [vmem:[#allocation5 + $0x260] sm:$0xff]
    %v212 = vld [vmem:[#allocation5 + $0x268] sm:$0xff]
    %v213 = vld [vmem:[#allocation5 + $0x270] sm:$0xff]
    %v214 = vld [vmem:[#allocation5 + $0x278] sm:$0xff]
    %v215 = vld [vmem:[#allocation5 + $0x280] sm:$0xff]
    %v216 = vld [vmem:[#allocation5 + $0x288] sm:$0xff]
    %v217 = vld [vmem:[#allocation5 + $0x290] sm:$0xff]
    %v218 = vld [vmem:[#allocation5 + $0x298] sm:$0xff]
    %v219 = vld [vmem:[#allocation5 + $0x2a0] sm:$0xff]
    %v220 = vld [vmem:[#allocation5 + $0x2a8] sm:$0xff]
    %v221 = vld [vmem:[#allocation5 + $0x2b0] sm:$0xff]
    %v222 = vld [vmem:[#allocation5 + $0x2b8] sm:$0xff]
    %v223 = vld [vmem:[#allocation5 + $0x2c0] sm:$0xff]
    %v224 = vld [vmem:[#allocation5 + $0x2c8] sm:$0xff]
    %v225 = vld [vmem:[#allocation5 + $0x2d0] sm:$0xff]
    %v226 = vld [vmem:[#allocation5 + $0x2d8] sm:$0xff]
    %v227 = vld [vmem:[#allocation5 + $0x2e0] sm:$0xff]
    %v228 = vld [vmem:[#allocation5 + $0x2e8] sm:$0xff]
    %v229 = vld [vmem:[#allocation5 + $0x2f0] sm:$0xff]
    %v230 = vld [vmem:[#allocation5 + $0x2f8] sm:$0xff]
    %v231 = vld [vmem:[#allocation5 + $0x300] sm:$0xff]
    %v232 = vld [vmem:[#allocation5 + $0x308] sm:$0xff]
    %v233 = vld [vmem:[#allocation5 + $0x310] sm:$0xff]
    %v234 = vld [vmem:[#allocation5 + $0x318] sm:$0xff]
    %v235 = vld [vmem:[#allocation5 + $0x320] sm:$0xff]
    %v236 = vld [vmem:[#allocation5 + $0x328] sm:$0xff]
    %v237 = vld [vmem:[#allocation5 + $0x330] sm:$0xff]
    %v238 = vld [vmem:[#allocation5 + $0x338] sm:$0xff]
    %v239 = vld [vmem:[#allocation5 + $0x340] sm:$0xff]
    %v240 = vld [vmem:[#allocation5 + $0x348] sm:$0xff]
    %v241 = vld [vmem:[#allocation5 + $0x350] sm:$0xff]
    %v242 = vld [vmem:[#allocation5 + $0x358] sm:$0xff]
    %v243 = vld [vmem:[#allocation5 + $0x360] sm:$0xff]
    %v244 = vld [vmem:[#allocation5 + $0x368] sm:$0xff]
    %v245 = vld [vmem:[#allocation5 + $0x370] sm:$0xff]
    %v246 = vld [vmem:[#allocation5 + $0x378] sm:$0xff]
    %v247 = vld [vmem:[#allocation5 + $0x380] sm:$0xff]
    %v248 = vld [vmem:[#allocation5 + $0x388] sm:$0xff]
    %v249 = vld [vmem:[#allocation5 + $0x390] sm:$0xff]
    %v250 = vld [vmem:[#allocation5 + $0x398] sm:$0xff]
    %v251 = vld [vmem:[#allocation5 + $0x3a0] sm:$0xff]
    %v252 = vld [vmem:[#allocation5 + $0x3a8] sm:$0xff]
    %v253 = vld [vmem:[#allocation5 + $0x3b0] sm:$0xff]
    %v254 = vld [vmem:[#allocation5 + $0x3b8] sm:$0xff]
    %v255 = vld [vmem:[#allocation5 + $0x3c0] sm:$0xff]
    %v256 = vld [vmem:[#allocation5 + $0x3c8] sm:$0xff]
    %v257 = vld [vmem:[#allocation5 + $0x3d0] sm:$0xff]
    %v258 = vld [vmem:[#allocation5 + $0x3d8] sm:$0xff]
    %v259 = vld [vmem:[#allocation5 + $0x3e0] sm:$0xff]
    %v260 = vld [vmem:[#allocation5 + $0x3e8] sm:$0xff]
    %v261 = vld [vmem:[#allocation5 + $0x3f0] sm:$0xff]
    %v262 = vld [vmem:[#allocation5 + $0x3f8] sm:$0xff]
    %v263 = vld [vmem:[#allocation5 + $0x400] sm:$0xff]
    %v264 = vld [vmem:[#allocation5 + $0x408] sm:$0xff]
    %v265 = vld [vmem:[#allocation5 + $0x410] sm:$0xff]
    %v266 = vld [vmem:[#allocation5 + $0x418] sm:$0xff]
    %v267 = vld [vmem:[#allocation5 + $0x420] sm:$0xff]
    %v268 = vld [vmem:[#allocation5 + $0x428] sm:$0xff]
    %v269 = vld [vmem:[#allocation5 + $0x430] sm:$0xff]
    %v270 = vld [vmem:[#allocation5 + $0x438] sm:$0xff]
    %v271 = vld [vmem:[#allocation5 + $0x440] sm:$0xff]
    %v272 = vld [vmem:[#allocation5 + $0x448] sm:$0xff]
    %v273 = vld [vmem:[#allocation5 + $0x450] sm:$0xff]
    %v274 = vld [vmem:[#allocation5 + $0x458] sm:$0xff]
    %v275 = vld [vmem:[#allocation5 + $0x460] sm:$0xff]
    %v276 = vld [vmem:[#allocation5 + $0x468] sm:$0xff]
    %v277 = vld [vmem:[#allocation5 + $0x470] sm:$0xff]
    %v278 = vld [vmem:[#allocation5 + $0x478] sm:$0xff]
    %v279 = vld [vmem:[#allocation5 + $0x480] sm:$0xff]
    %v280 = vld [vmem:[#allocation5 + $0x488] sm:$0xff]
    %v281 = vld [vmem:[#allocation5 + $0x490] sm:$0xff]
    %v282 = vld [vmem:[#allocation5 + $0x498] sm:$0xff]
    %v283 = vld [vmem:[#allocation5 + $0x4a0] sm:$0xff]
    %v284 = vld [vmem:[#allocation5 + $0x4a8] sm:$0xff]
    %v285 = vld [vmem:[#allocation5 + $0x4b0] sm:$0xff]
    %v286 = vld [vmem:[#allocation5 + $0x4b8] sm:$0xff]
    %v287 = vld [vmem:[#allocation5 + $0x4c0] sm:$0xff]
    %v288 = vld [vmem:[#allocation5 + $0x4c8] sm:$0xff]
    %v289 = vld [vmem:[#allocation5 + $0x4d0] sm:$0xff]
    %v290 = vld [vmem:[#allocation5 + $0x4d8] sm:$0xff]
    %v291 = vld [vmem:[#allocation5 + $0x4e0] sm:$0xff]
    %v292 = vld [vmem:[#allocation5 + $0x4e8] sm:$0xff]
    %v293 = vld [vmem:[#allocation5 + $0x4f0] sm:$0xff]
    %v294 = vld [vmem:[#allocation5 + $0x4f8] sm:$0xff]
    %v295 = vld [vmem:[#allocation5 + $0x500] sm:$0xff]
    %v296 = vld [vmem:[#allocation5 + $0x508] sm:$0xff]
    %v297 = vld [vmem:[#allocation5 + $0x510] sm:$0xff]
    %v298 = vld [vmem:[#allocation5 + $0x518] sm:$0xff]
    %v299 = vld [vmem:[#allocation5 + $0x520] sm:$0xff]
    %v300 = vld [vmem:[#allocation5 + $0x528] sm:$0xff]
    %v301 = vld [vmem:[#allocation5 + $0x530] sm:$0xff]
    %v302 = vld [vmem:[#allocation5 + $0x538] sm:$0xff]
    %v303 = vld [vmem:[#allocation5 + $0x540] sm:$0xff]
    %v304 = vld [vmem:[#allocation5 + $0x548] sm:$0xff]
    %v305 = vld [vmem:[#allocation5 + $0x550] sm:$0xff]
    %v306 = vld [vmem:[#allocation5 + $0x558] sm:$0xff]
    %v307 = vld [vmem:[#allocation5 + $0x560] sm:$0xff]
    %v308 = vld [vmem:[#allocation5 + $0x568] sm:$0xff]
    %v309 = vld [vmem:[#allocation5 + $0x570] sm:$0xff]
    %v310 = vld [vmem:[#allocation5 + $0x578] sm:$0xff]
    %v311 = vld [vmem:[#allocation5 + $0x580] sm:$0xff]
    %v312 = vld [vmem:[#allocation5 + $0x588] sm:$0xff]
    %v313 = vld [vmem:[#allocation5 + $0x590] sm:$0xff]
    %v314 = vld [vmem:[#allocation5 + $0x598] sm:$0xff]
    %v315 = vld [vmem:[#allocation5 + $0x5a0] sm:$0xff]
    %v316 = vld [vmem:[#allocation5 + $0x5a8] sm:$0xff]
    %v317 = vld [vmem:[#allocation5 + $0x5b0] sm:$0xff]
    %v318 = vld [vmem:[#allocation5 + $0x5b8] sm:$0xff]
    %v319 = vld [vmem:[#allocation5 + $0x5c0] sm:$0xff]
    %v320 = vld [vmem:[#allocation5 + $0x5c8] sm:$0xff]
    %v321 = vld [vmem:[#allocation5 + $0x5d0] sm:$0xff]
    %v322 = vld [vmem:[#allocation5 + $0x5d8] sm:$0xff]
    %v323 = vld [vmem:[#allocation5 + $0x5e0] sm:$0xff]
    %v324 = vld [vmem:[#allocation5 + $0x5e8] sm:$0xff]
    %v325 = vld [vmem:[#allocation5 + $0x5f0] sm:$0xff]
    %v326 = vld [vmem:[#allocation5 + $0x5f8] sm:$0xff]
    %v327 = vld [vmem:[#allocation5 + $0x600] sm:$0xff]
    %v328 = vld [vmem:[#allocation5 + $0x608] sm:$0xff]
    %v329 = vld [vmem:[#allocation5 + $0x610] sm:$0xff]
    %v330 = vld [vmem:[#allocation5 + $0x618] sm:$0xff]
    %v331 = vld [vmem:[#allocation5 + $0x620] sm:$0xff]
    %v332 = vld [vmem:[#allocation5 + $0x628] sm:$0xff]
    %v333 = vld [vmem:[#allocation5 + $0x630] sm:$0xff]
    %v334 = vld [vmem:[#allocation5 + $0x638] sm:$0xff]
    %v335 = vld [vmem:[#allocation5 + $0x640] sm:$0xff]
    %v336 = vld [vmem:[#allocation5 + $0x648] sm:$0xff]
    %v337 = vld [vmem:[#allocation5 + $0x650] sm:$0xff]
    %v338 = vld [vmem:[#allocation5 + $0x658] sm:$0xff]
    %v339 = vld [vmem:[#allocation5 + $0x660] sm:$0xff]
    %v340 = vld [vmem:[#allocation5 + $0x668] sm:$0xff]
    %v341 = vld [vmem:[#allocation5 + $0x670] sm:$0xff]
    %v342 = vld [vmem:[#allocation5 + $0x678] sm:$0xff]
    %v343 = vld [vmem:[#allocation5 + $0x680] sm:$0xff]
    %v344 = vld [vmem:[#allocation5 + $0x688] sm:$0xff]
    %v345 = vld [vmem:[#allocation5 + $0x690] sm:$0xff]
    %v346 = vld [vmem:[#allocation5 + $0x698] sm:$0xff]
    %v347 = vld [vmem:[#allocation5 + $0x6a0] sm:$0xff]
    %v348 = vld [vmem:[#allocation5 + $0x6a8] sm:$0xff]
    %v349 = vld [vmem:[#allocation5 + $0x6b0] sm:$0xff]
    %v350 = vld [vmem:[#allocation5 + $0x6b8] sm:$0xff]
    %v351 = vld [vmem:[#allocation5 + $0x6c0] sm:$0xff]
    %v352 = vld [vmem:[#allocation5 + $0x6c8] sm:$0xff]
    %v353 = vld [vmem:[#allocation5 + $0x6d0] sm:$0xff]
    %v354 = vld [vmem:[#allocation5 + $0x6d8] sm:$0xff]
    %v355 = vld [vmem:[#allocation5 + $0x6e0] sm:$0xff]
    %v356 = vld [vmem:[#allocation5 + $0x6e8] sm:$0xff]
    %v357 = vld [vmem:[#allocation5 + $0x6f0] sm:$0xff]
    %v358 = vld [vmem:[#allocation5 + $0x6f8] sm:$0xff]
    %v359 = vld [vmem:[#allocation5 + $0x700] sm:$0xff]
    %v360 = vld [vmem:[#allocation5 + $0x708] sm:$0xff]
    %v361 = vld [vmem:[#allocation5 + $0x710] sm:$0xff]
    %v362 = vld [vmem:[#allocation5 + $0x718] sm:$0xff]
    %v363 = vld [vmem:[#allocation5 + $0x720] sm:$0xff]
    %v364 = vld [vmem:[#allocation5 + $0x728] sm:$0xff]
    %v365 = vld [vmem:[#allocation5 + $0x730] sm:$0xff]
    %v366 = vld [vmem:[#allocation5 + $0x738] sm:$0xff]
    %v367 = vld [vmem:[#allocation5 + $0x740] sm:$0xff]
    %v368 = vld [vmem:[#allocation5 + $0x748] sm:$0xff]
    %v369 = vld [vmem:[#allocation5 + $0x750] sm:$0xff]
    %v370 = vld [vmem:[#allocation5 + $0x758] sm:$0xff]
    %v371 = vld [vmem:[#allocation5 + $0x760] sm:$0xff]
    %v372 = vld [vmem:[#allocation5 + $0x768] sm:$0xff]
    %v373 = vld [vmem:[#allocation5 + $0x770] sm:$0xff]
    %v374 = vld [vmem:[#allocation5 + $0x778] sm:$0xff]
    %v375 = vld [vmem:[#allocation5 + $0x780] sm:$0xff]
    %v376 = vld [vmem:[#allocation5 + $0x788] sm:$0xff]
    %v377 = vld [vmem:[#allocation5 + $0x790] sm:$0xff]
    %v378 = vld [vmem:[#allocation5 + $0x798] sm:$0xff]
    %v379 = vld [vmem:[#allocation5 + $0x7a0] sm:$0xff]
    %v380 = vld [vmem:[#allocation5 + $0x7a8] sm:$0xff]
    %v381 = vld [vmem:[#allocation5 + $0x7b0] sm:$0xff]
    %v382 = vld [vmem:[#allocation5 + $0x7b8] sm:$0xff]
    %v383 = vld [vmem:[#allocation5 + $0x7c0] sm:$0xff]
    %v384 = vld [vmem:[#allocation5 + $0x7c8] sm:$0xff]
    %v385 = vld [vmem:[#allocation5 + $0x7d0] sm:$0xff]
    %v386 = vld [vmem:[#allocation5 + $0x7d8] sm:$0xff]
    %v387 = vld [vmem:[#allocation5 + $0x7e0] sm:$0xff]
    %v388 = vld [vmem:[#allocation5 + $0x7e8] sm:$0xff]
    %v389 = vld [vmem:[#allocation5 + $0x7f0] sm:$0xff]
    %v390 = vld [vmem:[#allocation5 + $0x7f8] sm:$0xff]
    %v391 = vld [vmem:[#allocation5 + $0x800] sm:$0xff]
    %v392 = vld [vmem:[#allocation5 + $0x808] sm:$0xff]
    %v393 = vld [vmem:[#allocation5 + $0x810] sm:$0xff]
    %v394 = vld [vmem:[#allocation5 + $0x818] sm:$0xff]
    %v395 = vld [vmem:[#allocation5 + $0x820] sm:$0xff]
    %v396 = vld [vmem:[#allocation5 + $0x828] sm:$0xff]
    %v397 = vld [vmem:[#allocation5 + $0x830] sm:$0xff]
    %v398 = vld [vmem:[#allocation5 + $0x838] sm:$0xff]
    %v399 = vld [vmem:[#allocation5 + $0x840] sm:$0xff]
    %v400 = vld [vmem:[#allocation5 + $0x848] sm:$0xff]
    %v401 = vld [vmem:[#allocation5 + $0x850] sm:$0xff]
    %v402 = vld [vmem:[#allocation5 + $0x858] sm:$0xff]
    %v403 = vld [vmem:[#allocation5 + $0x860] sm:$0xff]
    %v404 = vld [vmem:[#allocation5 + $0x868] sm:$0xff]
    %v405 = vld [vmem:[#allocation5 + $0x870] sm:$0xff]
    %v406 = vld [vmem:[#allocation5 + $0x878] sm:$0xff]
    %v407 = vld [vmem:[#allocation5 + $0x880] sm:$0xff]
    %v408 = vld [vmem:[#allocation5 + $0x888] sm:$0xff]
    %v409 = vld [vmem:[#allocation5 + $0x890] sm:$0xff]
    %v410 = vld [vmem:[#allocation5 + $0x898] sm:$0xff]
    %v411 = vld [vmem:[#allocation5 + $0x8a0] sm:$0xff]
    %v412 = vld [vmem:[#allocation5 + $0x8a8] sm:$0xff]
    %v413 = vld [vmem:[#allocation5 + $0x8b0] sm:$0xff]
    %v414 = vld [vmem:[#allocation5 + $0x8b8] sm:$0xff]
    %v415 = vld [vmem:[#allocation5 + $0x8c0] sm:$0xff]
    %v416 = vld [vmem:[#allocation5 + $0x8c8] sm:$0xff]
    %v417 = vld [vmem:[#allocation5 + $0x8d0] sm:$0xff]
    %v418 = vld [vmem:[#allocation5 + $0x8d8] sm:$0xff]
    %v419 = vld [vmem:[#allocation5 + $0x8e0] sm:$0xff]
    %v420 = vld [vmem:[#allocation5 + $0x8e8] sm:$0xff]
    %v421 = vld [vmem:[#allocation5 + $0x8f0] sm:$0xff]
    %v422 = vld [vmem:[#allocation5 + $0x8f8] sm:$0xff]
    %v423 = vld [vmem:[#allocation5 + $0x900] sm:$0xff]
    %v424 = vld [vmem:[#allocation5 + $0x908] sm:$0xff]
    %v425 = vld [vmem:[#allocation5 + $0x910] sm:$0xff]
    %v426 = vld [vmem:[#allocation5 + $0x918] sm:$0xff]
    %v427 = vld [vmem:[#allocation5 + $0x920] sm:$0xff]
    %v428 = vld [vmem:[#allocation5 + $0x928] sm:$0xff]
    %v429 = vld [vmem:[#allocation7] sm:$0x7]
    %v431 = vperm.slane %v429, 0
    %v432 = vperm.slane %v429, 1
    %v433 = vperm.slane %v429, 2
    %vm437 = vcmask 130048
    %v439 = vsel %vm437, %v134, 0
    %441 = vmatpush.msra.mxu0 %v180
    %442 = vmatpush.msra.mxu0 %v177
    %443 = vmatpush.msra.mxu0 %v174
    %444 = vmatpush.msra.mxu0 %v171
    %445 = vmatpush.msra.mxu0 %v168
    %446 = vmatpush.msra.mxu0 %v165
    %447 = vmatpush.msra.mxu0 %v162
    %448 = vmatpush.msra.mxu0 %v159
    %449 = vmatpush.msra.mxu0 %v156
    %450 = vmatpush.msra.mxu0 %v153
    %451 = vmatpush.msra.mxu0 %v150
    %452 = vmatpush.msra.mxu0 %v147
    %453 = vmatpush.msra.mxu0 %v144
    %454 = vmatpush.msra.mxu0 %v141
    %455 = vmatpush.msra.mxu0 %v138
    %456 = vmatpush.msra.mxu0 %v135
    %457 = vmatmul.f32.gmra.mxu0 %v128
    %v458 = vpop.f32.mrf.mxu0
    %v459 = vadd.f32 %v431, %v458
    %460 = vdwg.mxu0
    %461 = vmatpush.msra.mxu0 %v228
    %462 = vmatpush.msra.mxu0 %v225
    %463 = vmatpush.msra.mxu0 %v222
    %464 = vmatpush.msra.mxu0 %v219
    %465 = vmatpush.msra.mxu0 %v216
    %466 = vmatpush.msra.mxu0 %v213
    %467 = vmatpush.msra.mxu0 %v210
    %468 = vmatpush.msra.mxu0 %v207
    %469 = vmatpush.msra.mxu0 %v204
    %470 = vmatpush.msra.mxu0 %v201
    %471 = vmatpush.msra.mxu0 %v198
    %472 = vmatpush.msra.mxu0 %v195
    %473 = vmatpush.msra.mxu0 %v192
    %474 = vmatpush.msra.mxu0 %v189
    %475 = vmatpush.msra.mxu0 %v186
    %476 = vmatpush.msra.mxu0 %v183
    %477 = vmatmul.f32.gmra.mxu0 %v129
    %v478 = vpop.f32.mrf.mxu0
    %v479 = vadd.f32 %v459, %v478
    %480 = vdwg.mxu0
    %481 = vmatpush.msra.mxu0 %v276
    %482 = vmatpush.msra.mxu0 %v273
    %483 = vmatpush.msra.mxu0 %v270
    %484 = vmatpush.msra.mxu0 %v267
    %485 = vmatpush.msra.mxu0 %v264
    %486 = vmatpush.msra.mxu0 %v261
    %487 = vmatpush.msra.mxu0 %v258
    %488 = vmatpush.msra.mxu0 %v255
    %489 = vmatpush.msra.mxu0 %v252
    %490 = vmatpush.msra.mxu0 %v249
    %491 = vmatpush.msra.mxu0 %v246
    %492 = vmatpush.msra.mxu0 %v243
    %493 = vmatpush.msra.mxu0 %v240
    %494 = vmatpush.msra.mxu0 %v237
    %495 = vmatpush.msra.mxu0 %v234
    %496 = vmatpush.msra.mxu0 %v231
    %497 = vmatmul.f32.gmra.mxu0 %v130
    %v498 = vpop.f32.mrf.mxu0
    %v499 = vadd.f32 %v479, %v498
    %500 = vdwg.mxu0
    %501 = vmatpush.msra.mxu0 %v324
    %502 = vmatpush.msra.mxu0 %v321
    %503 = vmatpush.msra.mxu0 %v318
    %504 = vmatpush.msra.mxu0 %v315
    %505 = vmatpush.msra.mxu0 %v312
    %506 = vmatpush.msra.mxu0 %v309
    %507 = vmatpush.msra.mxu0 %v306
    %508 = vmatpush.msra.mxu0 %v303
    %509 = vmatpush.msra.mxu0 %v300
    %510 = vmatpush.msra.mxu0 %v297
    %511 = vmatpush.msra.mxu0 %v294
    %512 = vmatpush.msra.mxu0 %v291
    %513 = vmatpush.msra.mxu0 %v288
    %514 = vmatpush.msra.mxu0 %v285
    %515 = vmatpush.msra.mxu0 %v282
    %516 = vmatpush.msra.mxu0 %v279
    %517 = vmatmul.f32.gmra.mxu0 %v131
    %v518 = vpop.f32.mrf.mxu0
    %v519 = vadd.f32 %v499, %v518
    %520 = vdwg.mxu0
    %521 = vmatpush.msra.mxu0 %v372
    %522 = vmatpush.msra.mxu0 %v369
    %523 = vmatpush.msra.mxu0 %v366
    %524 = vmatpush.msra.mxu0 %v363
    %525 = vmatpush.msra.mxu0 %v360
    %526 = vmatpush.msra.mxu0 %v357
    %527 = vmatpush.msra.mxu0 %v354
    %528 = vmatpush.msra.mxu0 %v351
    %529 = vmatpush.msra.mxu0 %v348
    %530 = vmatpush.msra.mxu0 %v345
    %531 = vmatpush.msra.mxu0 %v342
    %532 = vmatpush.msra.mxu0 %v339
    %533 = vmatpush.msra.mxu0 %v336
    %534 = vmatpush.msra.mxu0 %v333
    %535 = vmatpush.msra.mxu0 %v330
    %536 = vmatpush.msra.mxu0 %v327
    %537 = vmatmul.f32.gmra.mxu0 %v132
    %v538 = vpop.f32.mrf.mxu0
    %v539 = vadd.f32 %v519, %v538
    %540 = vdwg.mxu0
    %541 = vmatpush.msra.mxu0 %v420
    %542 = vmatpush.msra.mxu0 %v417
    %543 = vmatpush.msra.mxu0 %v414
    %544 = vmatpush.msra.mxu0 %v411
    %545 = vmatpush.msra.mxu0 %v408
    %546 = vmatpush.msra.mxu0 %v405
    %547 = vmatpush.msra.mxu0 %v402
    %548 = vmatpush.msra.mxu0 %v399
    %549 = vmatpush.msra.mxu0 %v396
    %550 = vmatpush.msra.mxu0 %v393
    %551 = vmatpush.msra.mxu0 %v390
    %552 = vmatpush.msra.mxu0 %v387
    %553 = vmatpush.msra.mxu0 %v384
    %554 = vmatpush.msra.mxu0 %v381
    %555 = vmatpush.msra.mxu0 %v378
    %556 = vmatpush.msra.mxu0 %v375
    %557 = vmatmul.f32.gmra.mxu0 %v133
    %v558 = vpop.f32.mrf.mxu0
    %v559 = vadd.f32 %v539, %v558
    %560 = vdwg.mxu0
    %561 = vmatpush.msra.mxu0 0.0
    %562 = vmatpush.msra.mxu0 0.0
    %563 = vmatpush.msra.mxu0 0.0
    %564 = vmatpush.msra.mxu0 0.0
    %565 = vmatpush.msra.mxu0 0.0
    %566 = vmatpush.msra.mxu0 0.0
    %567 = vmatpush.msra.mxu0 0.0
    %568 = vmatpush.msra.mxu0 0.0
    %569 = vmatpush.msra.mxu0 0.0
    %570 = vmatpush.msra.mxu0 0.0
    %571 = vmatpush.msra.mxu0 0.0
    %572 = vmatpush.msra.mxu0 0.0
    %573 = vmatpush.msra.mxu0 0.0
    %574 = vmatpush.msra.mxu0 0.0
    %575 = vmatpush.msra.mxu0 %v426
    %576 = vmatpush.msra.mxu0 %v423
    %577 = vmatmul.f32.gmra.mxu0 %v439
    %v578 = vpop.f32.mrf.mxu0
    %v579 = vadd.f32 %v559, %v578
    %580 = vdwg.mxu0
    %581 = vmatpush.msra.mxu0 %v181
    %582 = vmatpush.msra.mxu0 %v178
    %583 = vmatpush.msra.mxu0 %v175
    %584 = vmatpush.msra.mxu0 %v172
    %585 = vmatpush.msra.mxu0 %v169
    %586 = vmatpush.msra.mxu0 %v166
    %587 = vmatpush.msra.mxu0 %v163
    %588 = vmatpush.msra.mxu0 %v160
    %589 = vmatpush.msra.mxu0 %v157
    %590 = vmatpush.msra.mxu0 %v154
    %591 = vmatpush.msra.mxu0 %v151
    %592 = vmatpush.msra.mxu0 %v148
    %593 = vmatpush.msra.mxu0 %v145
    %594 = vmatpush.msra.mxu0 %v142
    %595 = vmatpush.msra.mxu0 %v139
    %596 = vmatpush.msra.mxu0 %v136
    %597 = vmatmul.f32.gmra.mxu0 %v128
    %v598 = vpop.f32.mrf.mxu0
    %v599 = vadd.f32 %v432, %v598
    %600 = vdwg.mxu0
    %601 = vmatpush.msra.mxu0 %v229
    %602 = vmatpush.msra.mxu0 %v226
    %603 = vmatpush.msra.mxu0 %v223
    %604 = vmatpush.msra.mxu0 %v220
    %605 = vmatpush.msra.mxu0 %v217
    %606 = vmatpush.msra.mxu0 %v214
    %607 = vmatpush.msra.mxu0 %v211
    %608 = vmatpush.msra.mxu0 %v208
    %609 = vmatpush.msra.mxu0 %v205
    %610 = vmatpush.msra.mxu0 %v202
    %611 = vmatpush.msra.mxu0 %v199
    %612 = vmatpush.msra.mxu0 %v196
    %613 = vmatpush.msra.mxu0 %v193
    %614 = vmatpush.msra.mxu0 %v190
    %615 = vmatpush.msra.mxu0 %v187
    %616 = vmatpush.msra.mxu0 %v184
    %617 = vmatmul.f32.gmra.mxu0 %v129
    %v618 = vpop.f32.mrf.mxu0
    %v619 = vadd.f32 %v599, %v618
    %620 = vdwg.mxu0
    %621 = vmatpush.msra.mxu0 %v277
    %622 = vmatpush.msra.mxu0 %v274
    %623 = vmatpush.msra.mxu0 %v271
    %624 = vmatpush.msra.mxu0 %v268
    %625 = vmatpush.msra.mxu0 %v265
    %626 = vmatpush.msra.mxu0 %v262
    %627 = vmatpush.msra.mxu0 %v259
    %628 = vmatpush.msra.mxu0 %v256
    %629 = vmatpush.msra.mxu0 %v253
    %630 = vmatpush.msra.mxu0 %v250
    %631 = vmatpush.msra.mxu0 %v247
    %632 = vmatpush.msra.mxu0 %v244
    %633 = vmatpush.msra.mxu0 %v241
    %634 = vmatpush.msra.mxu0 %v238
    %635 = vmatpush.msra.mxu0 %v235
    %636 = vmatpush.msra.mxu0 %v232
    %637 = vmatmul.f32.gmra.mxu0 %v130
    %v638 = vpop.f32.mrf.mxu0
    %v639 = vadd.f32 %v619, %v638
    %640 = vdwg.mxu0
    %641 = vmatpush.msra.mxu0 %v325
    %642 = vmatpush.msra.mxu0 %v322
    %643 = vmatpush.msra.mxu0 %v319
    %644 = vmatpush.msra.mxu0 %v316
    %645 = vmatpush.msra.mxu0 %v313
    %646 = vmatpush.msra.mxu0 %v310
    %647 = vmatpush.msra.mxu0 %v307
    %648 = vmatpush.msra.mxu0 %v304
    %649 = vmatpush.msra.mxu0 %v301
    %650 = vmatpush.msra.mxu0 %v298
    %651 = vmatpush.msra.mxu0 %v295
    %652 = vmatpush.msra.mxu0 %v292
    %653 = vmatpush.msra.mxu0 %v289
    %654 = vmatpush.msra.mxu0 %v286
    %655 = vmatpush.msra.mxu0 %v283
    %656 = vmatpush.msra.mxu0 %v280
    %657 = vmatmul.f32.gmra.mxu0 %v131
    %v658 = vpop.f32.mrf.mxu0
    %v659 = vadd.f32 %v639, %v658
    %660 = vdwg.mxu0
    %661 = vmatpush.msra.mxu0 %v373
    %662 = vmatpush.msra.mxu0 %v370
    %663 = vmatpush.msra.mxu0 %v367
    %664 = vmatpush.msra.mxu0 %v364
    %665 = vmatpush.msra.mxu0 %v361
    %666 = vmatpush.msra.mxu0 %v358
    %667 = vmatpush.msra.mxu0 %v355
    %668 = vmatpush.msra.mxu0 %v352
    %669 = vmatpush.msra.mxu0 %v349
    %670 = vmatpush.msra.mxu0 %v346
    %671 = vmatpush.msra.mxu0 %v343
    %672 = vmatpush.msra.mxu0 %v340
    %673 = vmatpush.msra.mxu0 %v337
    %674 = vmatpush.msra.mxu0 %v334
    %675 = vmatpush.msra.mxu0 %v331
    %676 = vmatpush.msra.mxu0 %v328
    %677 = vmatmul.f32.gmra.mxu0 %v132
    %v678 = vpop.f32.mrf.mxu0
    %v679 = vadd.f32 %v659, %v678
    %680 = vdwg.mxu0
    %681 = vmatpush.msra.mxu0 %v421
    %682 = vmatpush.msra.mxu0 %v418
    %683 = vmatpush.msra.mxu0 %v415
    %684 = vmatpush.msra.mxu0 %v412
    %685 = vmatpush.msra.mxu0 %v409
    %686 = vmatpush.msra.mxu0 %v406
    %687 = vmatpush.msra.mxu0 %v403
    %688 = vmatpush.msra.mxu0 %v400
    %689 = vmatpush.msra.mxu0 %v397
    %690 = vmatpush.msra.mxu0 %v394
    %691 = vmatpush.msra.mxu0 %v391
    %692 = vmatpush.msra.mxu0 %v388
    %693 = vmatpush.msra.mxu0 %v385
    %694 = vmatpush.msra.mxu0 %v382
    %695 = vmatpush.msra.mxu0 %v379
    %696 = vmatpush.msra.mxu0 %v376
    %697 = vmatmul.f32.gmra.mxu0 %v133
    %v698 = vpop.f32.mrf.mxu0
    %v699 = vadd.f32 %v679, %v698
    %700 = vdwg.mxu0
    %701 = vmatpush.msra.mxu0 0.0
    %702 = vmatpush.msra.mxu0 0.0
    %703 = vmatpush.msra.mxu0 0.0
    %704 = vmatpush.msra.mxu0 0.0
    %705 = vmatpush.msra.mxu0 0.0
    %706 = vmatpush.msra.mxu0 0.0
    %707 = vmatpush.msra.mxu0 0.0
    %708 = vmatpush.msra.mxu0 0.0
    %709 = vmatpush.msra.mxu0 0.0
    %710 = vmatpush.msra.mxu0 0.0
    %711 = vmatpush.msra.mxu0 0.0
    %712 = vmatpush.msra.mxu0 0.0
    %713 = vmatpush.msra.mxu0 0.0
    %714 = vmatpush.msra.mxu0 0.0
    %715 = vmatpush.msra.mxu0 %v427
    %716 = vmatpush.msra.mxu0 %v424
    %717 = vmatmul.f32.gmra.mxu0 %v439
    %v718 = vpop.f32.mrf.mxu0
    %v719 = vadd.f32 %v699, %v718
    %720 = vdwg.mxu0
    %721 = vmatpush.msra.mxu0 %v182
    %722 = vmatpush.msra.mxu0 %v179
    %723 = vmatpush.msra.mxu0 %v176
    %724 = vmatpush.msra.mxu0 %v173
    %725 = vmatpush.msra.mxu0 %v170
    %726 = vmatpush.msra.mxu0 %v167
    %727 = vmatpush.msra.mxu0 %v164
    %728 = vmatpush.msra.mxu0 %v161
    %729 = vmatpush.msra.mxu0 %v158
    %730 = vmatpush.msra.mxu0 %v155
    %731 = vmatpush.msra.mxu0 %v152
    %732 = vmatpush.msra.mxu0 %v149
    %733 = vmatpush.msra.mxu0 %v146
    %734 = vmatpush.msra.mxu0 %v143
    %735 = vmatpush.msra.mxu0 %v140
    %736 = vmatpush.msra.mxu0 %v137
    %737 = vmatmul.f32.gmra.mxu0 %v128
    %v738 = vpop.f32.mrf.mxu0
    %v739 = vadd.f32 %v433, %v738
    %740 = vdwg.mxu0
    %741 = vmatpush.msra.mxu0 %v230
    %742 = vmatpush.msra.mxu0 %v227
    %743 = vmatpush.msra.mxu0 %v224
    %744 = vmatpush.msra.mxu0 %v221
    %745 = vmatpush.msra.mxu0 %v218
    %746 = vmatpush.msra.mxu0 %v215
    %747 = vmatpush.msra.mxu0 %v212
    %748 = vmatpush.msra.mxu0 %v209
    %749 = vmatpush.msra.mxu0 %v206
    %750 = vmatpush.msra.mxu0 %v203
    %751 = vmatpush.msra.mxu0 %v200
    %752 = vmatpush.msra.mxu0 %v197
    %753 = vmatpush.msra.mxu0 %v194
    %754 = vmatpush.msra.mxu0 %v191
    %755 = vmatpush.msra.mxu0 %v188
    %756 = vmatpush.msra.mxu0 %v185
    %757 = vmatmul.f32.gmra.mxu0 %v129
    %v758 = vpop.f32.mrf.mxu0
    %v759 = vadd.f32 %v739, %v758
    %760 = vdwg.mxu0
    %761 = vmatpush.msra.mxu0 %v278
    %762 = vmatpush.msra.mxu0 %v275
    %763 = vmatpush.msra.mxu0 %v272
    %764 = vmatpush.msra.mxu0 %v269
    %765 = vmatpush.msra.mxu0 %v266
    %766 = vmatpush.msra.mxu0 %v263
    %767 = vmatpush.msra.mxu0 %v260
    %768 = vmatpush.msra.mxu0 %v257
    %769 = vmatpush.msra.mxu0 %v254
    %770 = vmatpush.msra.mxu0 %v251
    %771 = vmatpush.msra.mxu0 %v248
    %772 = vmatpush.msra.mxu0 %v245
    %773 = vmatpush.msra.mxu0 %v242
    %774 = vmatpush.msra.mxu0 %v239
    %775 = vmatpush.msra.mxu0 %v236
    %776 = vmatpush.msra.mxu0 %v233
    %777 = vmatmul.f32.gmra.mxu0 %v130
    %v778 = vpop.f32.mrf.mxu0
    %v779 = vadd.f32 %v759, %v778
    %780 = vdwg.mxu0
    %781 = vmatpush.msra.mxu0 %v326
    %782 = vmatpush.msra.mxu0 %v323
    %783 = vmatpush.msra.mxu0 %v320
    %784 = vmatpush.msra.mxu0 %v317
    %785 = vmatpush.msra.mxu0 %v314
    %786 = vmatpush.msra.mxu0 %v311
    %787 = vmatpush.msra.mxu0 %v308
    %788 = vmatpush.msra.mxu0 %v305
    %789 = vmatpush.msra.mxu0 %v302
    %790 = vmatpush.msra.mxu0 %v299
    %791 = vmatpush.msra.mxu0 %v296
    %792 = vmatpush.msra.mxu0 %v293
    %793 = vmatpush.msra.mxu0 %v290
    %794 = vmatpush.msra.mxu0 %v287
    %795 = vmatpush.msra.mxu0 %v284
    %796 = vmatpush.msra.mxu0 %v281
    %797 = vmatmul.f32.gmra.mxu0 %v131
    %v798 = vpop.f32.mrf.mxu0
    %v799 = vadd.f32 %v779, %v798
    %800 = vdwg.mxu0
    %801 = vmatpush.msra.mxu0 %v374
    %802 = vmatpush.msra.mxu0 %v371
    %803 = vmatpush.msra.mxu0 %v368
    %804 = vmatpush.msra.mxu0 %v365
    %805 = vmatpush.msra.mxu0 %v362
    %806 = vmatpush.msra.mxu0 %v359
    %807 = vmatpush.msra.mxu0 %v356
    %808 = vmatpush.msra.mxu0 %v353
    %809 = vmatpush.msra.mxu0 %v350
    %810 = vmatpush.msra.mxu0 %v347
    %811 = vmatpush.msra.mxu0 %v344
    %812 = vmatpush.msra.mxu0 %v341
    %813 = vmatpush.msra.mxu0 %v338
    %814 = vmatpush.msra.mxu0 %v335
    %815 = vmatpush.msra.mxu0 %v332
    %816 = vmatpush.msra.mxu0 %v329
    %817 = vmatmul.f32.gmra.mxu0 %v132
    %v818 = vpop.f32.mrf.mxu0
    %v819 = vadd.f32 %v799, %v818
    %820 = vdwg.mxu0
    %821 = vmatpush.msra.mxu0 %v422
    %822 = vmatpush.msra.mxu0 %v419
    %823 = vmatpush.msra.mxu0 %v416
    %824 = vmatpush.msra.mxu0 %v413
    %825 = vmatpush.msra.mxu0 %v410
    %826 = vmatpush.msra.mxu0 %v407
    %827 = vmatpush.msra.mxu0 %v404
    %828 = vmatpush.msra.mxu0 %v401
    %829 = vmatpush.msra.mxu0 %v398
    %830 = vmatpush.msra.mxu0 %v395
    %831 = vmatpush.msra.mxu0 %v392
    %832 = vmatpush.msra.mxu0 %v389
    %833 = vmatpush.msra.mxu0 %v386
    %834 = vmatpush.msra.mxu0 %v383
    %835 = vmatpush.msra.mxu0 %v380
    %836 = vmatpush.msra.mxu0 %v377
    %837 = vmatmul.f32.gmra.mxu0 %v133
    %v838 = vpop.f32.mrf.mxu0
    %v839 = vadd.f32 %v819, %v838
    %840 = vdwg.mxu0
    %841 = vmatpush.msra.mxu0 0.0
    %842 = vmatpush.msra.mxu0 0.0
    %843 = vmatpush.msra.mxu0 0.0
    %844 = vmatpush.msra.mxu0 0.0
    %845 = vmatpush.msra.mxu0 0.0
    %846 = vmatpush.msra.mxu0 0.0
    %847 = vmatpush.msra.mxu0 0.0
    %848 = vmatpush.msra.mxu0 0.0
    %849 = vmatpush.msra.mxu0 0.0
    %850 = vmatpush.msra.mxu0 0.0
    %851 = vmatpush.msra.mxu0 0.0
    %852 = vmatpush.msra.mxu0 0.0
    %853 = vmatpush.msra.mxu0 0.0
    %854 = vmatpush.msra.mxu0 0.0
    %855 = vmatpush.msra.mxu0 %v428
    %856 = vmatpush.msra.mxu0 %v425
    %857 = vmatmul.f32.gmra.mxu0 %v439
    %v858 = vpop.f32.mrf.mxu0
    %v859 = vadd.f32 %v839, %v858
    %860 = vdwg.mxu0
    %v861 = vmax.f32 %v579, 0.0
    %v862 = vmax.f32 %v719, 0.0
    %v863 = vmax.f32 %v859, 0.0
    %v864 = vld [vmem:[#allocation8] sm:$0xff]
    %v865 = vld [vmem:[#allocation8 + $0x8] sm:$0xff]
    %v866 = vld [vmem:[#allocation8 + $0x10] sm:$0xff]
    %v867 = vld [vmem:[#allocation8 + $0x18] sm:$0xff]
    %v868 = vld [vmem:[#allocation8 + $0x20] sm:$0xff]
    %v869 = vld [vmem:[#allocation8 + $0x28] sm:$0xff]
    %v870 = vld [vmem:[#allocation8 + $0x30] sm:$0xff]
    %v871 = vld [vmem:[#allocation8 + $0x38] sm:$0xff]
    %v872 = vld [vmem:[#allocation8 + $0x40] sm:$0xff]
    %v873 = vld [vmem:[#allocation8 + $0x48] sm:$0xff]
    %v874 = vld [vmem:[#allocation8 + $0x50] sm:$0xff]
    %v875 = vld [vmem:[#allocation8 + $0x58] sm:$0xff]
    %v876 = vld [vmem:[#allocation8 + $0x60] sm:$0xff]
    %v877 = vld [vmem:[#allocation8 + $0x68] sm:$0xff]
    %v878 = vld [vmem:[#allocation8 + $0x70] sm:$0xff]
    %v879 = vld [vmem:[#allocation8 + $0x78] sm:$0xff]
    %v880 = vld [vmem:[#allocation8 + $0x80] sm:$0xff]
    %v881 = vld [vmem:[#allocation8 + $0x88] sm:$0xff]
    %v882 = vld [vmem:[#allocation8 + $0x90] sm:$0xff]
    %v883 = vld [vmem:[#allocation8 + $0x98] sm:$0xff]
    %v884 = vld [vmem:[#allocation8 + $0xa0] sm:$0xff]
    %v885 = vld [vmem:[#allocation8 + $0xa8] sm:$0xff]
    %v886 = vld [vmem:[#allocation8 + $0xb0] sm:$0xff]
    %v887 = vld [vmem:[#allocation8 + $0xb8] sm:$0xff]
    %v888 = vld [vmem:[#allocation8 + $0xc0] sm:$0xff]
    %v889 = vld [vmem:[#allocation8 + $0xc8] sm:$0xff]
    %v890 = vld [vmem:[#allocation8 + $0xd0] sm:$0xff]
    %v891 = vld [vmem:[#allocation8 + $0xd8] sm:$0xff]
    %v892 = vld [vmem:[#allocation8 + $0xe0] sm:$0xff]
    %v893 = vld [vmem:[#allocation8 + $0xe8] sm:$0xff]
    %v894 = vld [vmem:[#allocation8 + $0xf0] sm:$0xff]
    %v895 = vld [vmem:[#allocation8 + $0xf8] sm:$0xff]
    %v896 = vld [vmem:[#allocation8 + $0x100] sm:$0xff]
    %v897 = vld [vmem:[#allocation8 + $0x108] sm:$0xff]
    %v898 = vld [vmem:[#allocation8 + $0x110] sm:$0xff]
    %v899 = vld [vmem:[#allocation8 + $0x118] sm:$0xff]
    %v900 = vld [vmem:[#allocation8 + $0x120] sm:$0xff]
    %v901 = vld [vmem:[#allocation8 + $0x128] sm:$0xff]
    %v902 = vld [vmem:[#allocation8 + $0x130] sm:$0xff]
    %v903 = vld [vmem:[#allocation8 + $0x138] sm:$0xff]
    %v904 = vld [vmem:[#allocation8 + $0x140] sm:$0xff]
    %v905 = vld [vmem:[#allocation8 + $0x148] sm:$0xff]
    %v906 = vld [vmem:[#allocation8 + $0x150] sm:$0xff]
    %v907 = vld [vmem:[#allocation8 + $0x158] sm:$0xff]
    %v908 = vld [vmem:[#allocation8 + $0x160] sm:$0xff]
    %v909 = vld [vmem:[#allocation8 + $0x168] sm:$0xff]
    %v910 = vld [vmem:[#allocation8 + $0x170] sm:$0xff]
    %v911 = vld [vmem:[#allocation8 + $0x178] sm:$0xff]
    %v912 = vld [vmem:[#allocation8 + $0x180] sm:$0xff]
    %v913 = vld [vmem:[#allocation8 + $0x188] sm:$0xff]
    %v914 = vld [vmem:[#allocation8 + $0x190] sm:$0xff]
    %v915 = vld [vmem:[#allocation8 + $0x198] sm:$0xff]
    %v916 = vld [vmem:[#allocation8 + $0x1a0] sm:$0xff]
    %v917 = vld [vmem:[#allocation8 + $0x1a8] sm:$0xff]
    %v918 = vld [vmem:[#allocation8 + $0x1b0] sm:$0xff]
    %v919 = vld [vmem:[#allocation8 + $0x1b8] sm:$0xff]
    %v920 = vld [vmem:[#allocation8 + $0x1c0] sm:$0xff]
    %v921 = vld [vmem:[#allocation8 + $0x1c8] sm:$0xff]
    %v922 = vld [vmem:[#allocation8 + $0x1d0] sm:$0xff]
    %v923 = vld [vmem:[#allocation8 + $0x1d8] sm:$0xff]
    %v924 = vld [vmem:[#allocation8 + $0x1e0] sm:$0xff]
    %v925 = vld [vmem:[#allocation8 + $0x1e8] sm:$0xff]
    %v926 = vld [vmem:[#allocation8 + $0x1f0] sm:$0xff]
    %v927 = vld [vmem:[#allocation8 + $0x1f8] sm:$0xff]
    %v928 = vld [vmem:[#allocation8 + $0x200] sm:$0xff]
    %v929 = vld [vmem:[#allocation8 + $0x208] sm:$0xff]
    %v930 = vld [vmem:[#allocation8 + $0x210] sm:$0xff]
    %v931 = vld [vmem:[#allocation8 + $0x218] sm:$0xff]
    %v932 = vld [vmem:[#allocation8 + $0x220] sm:$0xff]
    %v933 = vld [vmem:[#allocation8 + $0x228] sm:$0xff]
    %v934 = vld [vmem:[#allocation8 + $0x230] sm:$0xff]
    %v935 = vld [vmem:[#allocation8 + $0x238] sm:$0xff]
    %v936 = vld [vmem:[#allocation8 + $0x240] sm:$0xff]
    %v937 = vld [vmem:[#allocation8 + $0x248] sm:$0xff]
    %v938 = vld [vmem:[#allocation8 + $0x250] sm:$0xff]
    %v939 = vld [vmem:[#allocation8 + $0x258] sm:$0xff]
    %v940 = vld [vmem:[#allocation8 + $0x260] sm:$0xff]
    %v941 = vld [vmem:[#allocation8 + $0x268] sm:$0xff]
    %v942 = vld [vmem:[#allocation8 + $0x270] sm:$0xff]
    %v943 = vld [vmem:[#allocation8 + $0x278] sm:$0xff]
    %v944 = vld [vmem:[#allocation8 + $0x280] sm:$0xff]
    %v945 = vld [vmem:[#allocation8 + $0x288] sm:$0xff]
    %v946 = vld [vmem:[#allocation8 + $0x290] sm:$0xff]
    %v947 = vld [vmem:[#allocation8 + $0x298] sm:$0xff]
    %v948 = vld [vmem:[#allocation8 + $0x2a0] sm:$0xff]
    %v949 = vld [vmem:[#allocation8 + $0x2a8] sm:$0xff]
    %v950 = vld [vmem:[#allocation8 + $0x2b0] sm:$0xff]
    %v951 = vld [vmem:[#allocation8 + $0x2b8] sm:$0xff]
    %v952 = vld [vmem:[#allocation8 + $0x2c0] sm:$0xff]
    %v953 = vld [vmem:[#allocation8 + $0x2c8] sm:$0xff]
    %v954 = vld [vmem:[#allocation8 + $0x2d0] sm:$0xff]
    %v955 = vld [vmem:[#allocation8 + $0x2d8] sm:$0xff]
    %v956 = vld [vmem:[#allocation8 + $0x2e0] sm:$0xff]
    %v957 = vld [vmem:[#allocation8 + $0x2e8] sm:$0xff]
    %v958 = vld [vmem:[#allocation8 + $0x2f0] sm:$0xff]
    %v959 = vld [vmem:[#allocation8 + $0x2f8] sm:$0xff]
    %v960 = vld [vmem:[#allocation10] sm:$0x3]
    %v962 = vperm.slane %v960, 0
    %v963 = vperm.slane %v960, 1
    %966 = vmatpush.msra.mxu0 %v894
    %967 = vmatpush.msra.mxu0 %v892
    %968 = vmatpush.msra.mxu0 %v890
    %969 = vmatpush.msra.mxu0 %v888
    %970 = vmatpush.msra.mxu0 %v886
    %971 = vmatpush.msra.mxu0 %v884
    %972 = vmatpush.msra.mxu0 %v882
    %973 = vmatpush.msra.mxu0 %v880
    %974 = vmatpush.msra.mxu0 %v878
    %975 = vmatpush.msra.mxu0 %v876
    %976 = vmatpush.msra.mxu0 %v874
    %977 = vmatpush.msra.mxu0 %v872
    %978 = vmatpush.msra.mxu0 %v870
    %979 = vmatpush.msra.mxu0 %v868
    %980 = vmatpush.msra.mxu0 %v866
    %981 = vmatpush.msra.mxu0 %v864
    %982 = vmatmul.f32.gmra.mxu0 %v861
    %v983 = vpop.f32.mrf.mxu0
    %v984 = vadd.f32 %v962, %v983
    %985 = vdwg.mxu0
    %986 = vmatpush.msra.mxu0 %v926
    %987 = vmatpush.msra.mxu0 %v924
    %988 = vmatpush.msra.mxu0 %v922
    %989 = vmatpush.msra.mxu0 %v920
    %990 = vmatpush.msra.mxu0 %v918
    %991 = vmatpush.msra.mxu0 %v916
    %992 = vmatpush.msra.mxu0 %v914
    %993 = vmatpush.msra.mxu0 %v912
    %994 = vmatpush.msra.mxu0 %v910
    %995 = vmatpush.msra.mxu0 %v908
    %996 = vmatpush.msra.mxu0 %v906
    %997 = vmatpush.msra.mxu0 %v904
    %998 = vmatpush.msra.mxu0 %v902
    %999 = vmatpush.msra.mxu0 %v900
    %1000 = vmatpush.msra.mxu0 %v898
    %1001 = vmatpush.msra.mxu0 %v896
    %1002 = vmatmul.f32.gmra.mxu0 %v862
    %v1003 = vpop.f32.mrf.mxu0
    %v1004 = vadd.f32 %v984, %v1003
    %1005 = vdwg.mxu0
    %1006 = vmatpush.msra.mxu0 %v958
    %1007 = vmatpush.msra.mxu0 %v956
    %1008 = vmatpush.msra.mxu0 %v954
    %1009 = vmatpush.msra.mxu0 %v952
    %1010 = vmatpush.msra.mxu0 %v950
    %1011 = vmatpush.msra.mxu0 %v948
    %1012 = vmatpush.msra.mxu0 %v946
    %1013 = vmatpush.msra.mxu0 %v944
    %1014 = vmatpush.msra.mxu0 %v942
    %1015 = vmatpush.msra.mxu0 %v940
    %1016 = vmatpush.msra.mxu0 %v938
    %1017 = vmatpush.msra.mxu0 %v936
    %1018 = vmatpush.msra.mxu0 %v934
    %1019 = vmatpush.msra.mxu0 %v932
    %1020 = vmatpush.msra.mxu0 %v930
    %1021 = vmatpush.msra.mxu0 %v928
    %1022 = vmatmul.f32.gmra.mxu0 %v863
    %v1023 = vpop.f32.mrf.mxu0
    %v1024 = vadd.f32 %v1004, %v1023
    %1025 = vdwg.mxu0
    %1026 = vmatpush.msra.mxu0 %v895
    %1027 = vmatpush.msra.mxu0 %v893
    %1028 = vmatpush.msra.mxu0 %v891
    %1029 = vmatpush.msra.mxu0 %v889
    %1030 = vmatpush.msra.mxu0 %v887
    %1031 = vmatpush.msra.mxu0 %v885
    %1032 = vmatpush.msra.mxu0 %v883
    %1033 = vmatpush.msra.mxu0 %v881
    %1034 = vmatpush.msra.mxu0 %v879
    %1035 = vmatpush.msra.mxu0 %v877
    %1036 = vmatpush.msra.mxu0 %v875
    %1037 = vmatpush.msra.mxu0 %v873
    %1038 = vmatpush.msra.mxu0 %v871
    %1039 = vmatpush.msra.mxu0 %v869
    %1040 = vmatpush.msra.mxu0 %v867
    %1041 = vmatpush.msra.mxu0 %v865
    %1042 = vmatmul.f32.gmra.mxu0 %v861
    %v1043 = vpop.f32.mrf.mxu0
    %v1044 = vadd.f32 %v963, %v1043
    %1045 = vdwg.mxu0
    %1046 = vmatpush.msra.mxu0 %v927
    %1047 = vmatpush.msra.mxu0 %v925
    %1048 = vmatpush.msra.mxu0 %v923
    %1049 = vmatpush.msra.mxu0 %v921
    %1050 = vmatpush.msra.mxu0 %v919
    %1051 = vmatpush.msra.mxu0 %v917
    %1052 = vmatpush.msra.mxu0 %v915
    %1053 = vmatpush.msra.mxu0 %v913
    %1054 = vmatpush.msra.mxu0 %v911
    %1055 = vmatpush.msra.mxu0 %v909
    %1056 = vmatpush.msra.mxu0 %v907
    %1057 = vmatpush.msra.mxu0 %v905
    %1058 = vmatpush.msra.mxu0 %v903
    %1059 = vmatpush.msra.mxu0 %v901
    %1060 = vmatpush.msra.mxu0 %v899
    %1061 = vmatpush.msra.mxu0 %v897
    %1062 = vmatmul.f32.gmra.mxu0 %v862
    %v1063 = vpop.f32.mrf.mxu0
    %v1064 = vadd.f32 %v1044, %v1063
    %1065 = vdwg.mxu0
    %1066 = vmatpush.msra.mxu0 %v959
    %1067 = vmatpush.msra.mxu0 %v957
    %1068 = vmatpush.msra.mxu0 %v955
    %1069 = vmatpush.msra.mxu0 %v953
    %1070 = vmatpush.msra.mxu0 %v951
    %1071 = vmatpush.msra.mxu0 %v949
    %1072 = vmatpush.msra.mxu0 %v947
    %1073 = vmatpush.msra.mxu0 %v945
    %1074 = vmatpush.msra.mxu0 %v943
    %1075 = vmatpush.msra.mxu0 %v941
    %1076 = vmatpush.msra.mxu0 %v939
    %1077 = vmatpush.msra.mxu0 %v937
    %1078 = vmatpush.msra.mxu0 %v935
    %1079 = vmatpush.msra.mxu0 %v933
    %1080 = vmatpush.msra.mxu0 %v931
    %1081 = vmatpush.msra.mxu0 %v929
    %1082 = vmatmul.f32.gmra.mxu0 %v863
    %v1083 = vpop.f32.mrf.mxu0
    %v1084 = vadd.f32 %v1064, %v1083
    %1085 = vdwg.mxu0
    %v1086 = vmax.f32 %v1024, 0.0
    %v1087 = vmax.f32 %v1084, 0.0
    %v1088 = vld [vmem:[#allocation11] sm:$0xff]
    %v1089 = vld [vmem:[#allocation11 + $0x8] sm:$0xff]
    %v1090 = vld [vmem:[#allocation11 + $0x10] sm:$0xff]
    %v1091 = vld [vmem:[#allocation11 + $0x18] sm:$0xff]
    %v1092 = vld [vmem:[#allocation11 + $0x20] sm:$0xff]
    %v1093 = vld [vmem:[#allocation11 + $0x28] sm:$0xff]
    %v1094 = vld [vmem:[#allocation11 + $0x30] sm:$0xff]
    %v1095 = vld [vmem:[#allocation11 + $0x38] sm:$0xff]
    %v1096 = vld [vmem:[#allocation11 + $0x40] sm:$0xff]
    %v1097 = vld [vmem:[#allocation11 + $0x48] sm:$0xff]
    %v1098 = vld [vmem:[#allocation11 + $0x50] sm:$0xff]
    %v1099 = vld [vmem:[#allocation11 + $0x58] sm:$0xff]
    %v1100 = vld [vmem:[#allocation11 + $0x60] sm:$0xff]
    %v1101 = vld [vmem:[#allocation11 + $0x68] sm:$0xff]
    %v1102 = vld [vmem:[#allocation11 + $0x70] sm:$0xff]
    %v1103 = vld [vmem:[#allocation11 + $0x78] sm:$0xff]
    %v1104 = vld [vmem:[#allocation11 + $0x80] sm:$0xff]
    %v1105 = vld [vmem:[#allocation11 + $0x88] sm:$0xff]
    %v1106 = vld [vmem:[#allocation11 + $0x90] sm:$0xff]
    %v1107 = vld [vmem:[#allocation11 + $0x98] sm:$0xff]
    %v1108 = vld [vmem:[#allocation11 + $0xa0] sm:$0xff]
    %v1109 = vld [vmem:[#allocation11 + $0xa8] sm:$0xff]
    %v1110 = vld [vmem:[#allocation11 + $0xb0] sm:$0xff]
    %v1111 = vld [vmem:[#allocation11 + $0xb8] sm:$0xff]
    %v1112 = vld [vmem:[#allocation11 + $0xc0] sm:$0xff]
    %v1113 = vld [vmem:[#allocation11 + $0xc8] sm:$0xff]
    %v1114 = vld [vmem:[#allocation11 + $0xd0] sm:$0xff]
    %v1115 = vld [vmem:[#allocation11 + $0xd8] sm:$0xff]
    %v1116 = vld [vmem:[#allocation11 + $0xe0] sm:$0xff]
    %v1117 = vld [vmem:[#allocation11 + $0xe8] sm:$0xff]
    %v1118 = vld [vmem:[#allocation11 + $0xf0] sm:$0xff]
    %v1119 = vld [vmem:[#allocation11 + $0xf8] sm:$0xff]
    %v1120 = vld [vmem:[#allocation13] sm:$0x1]
    %v1122 = vperm.slane %v1120, 0
    %1124 = vmatpush.msra.mxu0 %v1103
    %1125 = vmatpush.msra.mxu0 %v1102
    %1126 = vmatpush.msra.mxu0 %v1101
    %1127 = vmatpush.msra.mxu0 %v1100
    %1128 = vmatpush.msra.mxu0 %v1099
    %1129 = vmatpush.msra.mxu0 %v1098
    %1130 = vmatpush.msra.mxu0 %v1097
    %1131 = vmatpush.msra.mxu0 %v1096
    %1132 = vmatpush.msra.mxu0 %v1095
    %1133 = vmatpush.msra.mxu0 %v1094
    %1134 = vmatpush.msra.mxu0 %v1093
    %1135 = vmatpush.msra.mxu0 %v1092
    %1136 = vmatpush.msra.mxu0 %v1091
    %1137 = vmatpush.msra.mxu0 %v1090
    %1138 = vmatpush.msra.mxu0 %v1089
    %1139 = vmatpush.msra.mxu0 %v1088
    %1140 = vmatmul.f32.gmra.mxu0 %v1086
    %v1141 = vpop.f32.mrf.mxu0
    %v1142 = vadd.f32 %v1122, %v1141
    %1143 = vdwg.mxu0
    %1144 = vmatpush.msra.mxu0 %v1119
    %1145 = vmatpush.msra.mxu0 %v1118
    %1146 = vmatpush.msra.mxu0 %v1117
    %1147 = vmatpush.msra.mxu0 %v1116
    %1148 = vmatpush.msra.mxu0 %v1115
    %1149 = vmatpush.msra.mxu0 %v1114
    %1150 = vmatpush.msra.mxu0 %v1113
    %1151 = vmatpush.msra.mxu0 %v1112
    %1152 = vmatpush.msra.mxu0 %v1111
    %1153 = vmatpush.msra.mxu0 %v1110
    %1154 = vmatpush.msra.mxu0 %v1109
    %1155 = vmatpush.msra.mxu0 %v1108
    %1156 = vmatpush.msra.mxu0 %v1107
    %1157 = vmatpush.msra.mxu0 %v1106
    %1158 = vmatpush.msra.mxu0 %v1105
    %1159 = vmatpush.msra.mxu0 %v1104
    %1160 = vmatmul.f32.gmra.mxu0 %v1087
    %v1161 = vpop.f32.mrf.mxu0
    %v1162 = vadd.f32 %v1142, %v1161
    %1163 = vdwg.mxu0
    %1164 = vst [vmem:[#allocation14] sm:$0xff] %v1162
    // Predicated region
    $region58: #{tpu_custom_call.1} parent=1 // pred_check
      _
    $region59: #{tpu_custom_call.1} parent=1 // pred_check_branch
      %1166 = sbr.rel (0) target = $region61
    $region60: #{tpu_custom_call.1} parent=1 // pred_region
      %1168 = vsyncadd [#allocation4], 0
      %s1170 = sshll.u32 [#allocation14], 4
      %s1171 = int_to_ptr.vmem [resolvable:$true] %s1170
      %s1172 = sshll.u32 %s7, 4
      %s1173 = int_to_ptr.hbm [resolvable:$true] %s1172
      %1175 = dma.vmem_to_hbm [thread:$0]  %s1171, 128, %s1173, [#allocation4]
    $region61: #{tpu_custom_call.1} parent=1 // pred_fallthru
      _
    // Predicated region
    $region62: #{tpu_custom_call.1} parent=1 // pred_check
      _
    $region63: #{tpu_custom_call.1} parent=1 // pred_check_branch
      %1177 = sbr.rel (0) target = $region65
    $region64: #{tpu_custom_call.1} parent=1 // pred_region
      %1179 = dma.done [#allocation4], 128
    $region65: #{tpu_custom_call.1} parent=1 // pred_fallthru
      _
    %1180 = vsyncpa [#allocation3], 1
    %1181 = vsyncpa [#allocation6], 1
    %1182 = vsyncpa [#allocation9], 1
    %1183 = vsyncpa [#allocation12], 1
    %1184 = vsyncpa [#allocation4], 1

</llo_original>
